<compile_context>
chip_gen: v6e
topology: v6e:2x2x1
jax: 0.10.0
libtpu: 0.0.40
codegen_flags: <defaults>
</compile_context>

<pallas_src>
import math
import functools

import numpy as np
import jax
import jax.numpy as jnp
from jax import lax
from jax.experimental import pallas as pl
from jax.experimental.pallas import tpu as pltpu


def _rope_block_kernel(n_head,
                       x_ref, ln1g_ref, ln1b_ref,
                       wqkv_ref, bqkv_ref, wproj_ref, bproj_ref,
                       ln2g_ref, ln2b_ref, w1_ref, b1_ref, w2_ref, b2_ref,
                       cos_ref, sins_ref,
                       o_ref,
                       y_acc_ref):
    x = x_ref[0]                                   # (T, C) for this batch element
    T, C = x.shape
    hd = C // n_head
    hd2 = hd // 2
    half = C // 2

    def layer_norm(v, g, b):
        mu = jnp.mean(v, axis=-1, keepdims=True)
        var = jnp.mean((v - mu) ** 2, axis=-1, keepdims=True)
        return (v - mu) * lax.rsqrt(var + 1e-5) * g + b

    cos_t = cos_ref[...]                           # (T, C) grouped-layout cos
    sins_t = sins_ref[...]                         # (T, C) sign-folded sin

    def rope(t):
        # grouped half-split layout: rotate_half == lane roll by C//2
        # (sign folded into sins_t) -> XLU work instead of an MXU matmul.
        return t * cos_t + pltpu.roll(t, shift=half, axis=1) * sins_t

    # float 0/1 causal mask, generated in-kernel.  It is ADDED to the scaled
    # logits, faithfully matching torch SDPA with a float attn_mask.
    row = lax.broadcasted_iota(jnp.int32, (T, T), 0)
    col = lax.broadcasted_iota(jnp.int32, (T, T), 1)
    causal = (row >= col).astype(jnp.float32)

    # ---- attention branch -------------------------------------------------
    h1 = layer_norm(x, ln1g_ref[...], ln1b_ref[...])
    qkv = jnp.dot(h1.astype(jnp.bfloat16), wqkv_ref[...],
                  preferred_element_type=jnp.float32) + bqkv_ref[...]

    q = rope(qkv[:, :C])            # 1/sqrt(hd) already folded into w_q / b_q
    k = rope(qkv[:, C:2 * C])
    qb = q.astype(jnp.bfloat16)
    kb = k.astype(jnp.bfloat16)
    vb = qkv[:, 2 * C:].astype(jnp.bfloat16)

    dn = (((1,), (1,)), ((), ()))                  # q @ k^T: contract feature dims
    for hh in range(n_head):
        s1 = slice(hh * hd2, (hh + 1) * hd2)                       # even features
        s2 = slice(half + hh * hd2, half + (hh + 1) * hd2)         # odd features
        att = (lax.dot_general(qb[:, s1], kb[:, s1], dn,
                               preferred_element_type=jnp.float32)
               + lax.dot_general(qb[:, s2], kb[:, s2], dn,
                                 preferred_element_type=jnp.float32)
               + causal)
        att = att - jnp.max(att, axis=-1, keepdims=True)
        e = jnp.exp(att)
        p = e * pl.reciprocal(jnp.sum(e, axis=-1, keepdims=True), approx=True)
        # write this head's output straight into its (T, hd) slice of the slab
        y_acc_ref[:, hh * hd:(hh + 1) * hd] = jnp.dot(
            p.astype(jnp.bfloat16), vb[:, hh * hd:(hh + 1) * hd],
            preferred_element_type=jnp.float32)

    y = jnp.dot(y_acc_ref[...].astype(jnp.bfloat16), wproj_ref[...],
                preferred_element_type=jnp.float32) + bproj_ref[...]
    out1 = x + y

    # ---- feed-forward branch ----------------------------------------------
    h2 = layer_norm(out1, ln2g_ref[...], ln2b_ref[...])
    f = jnp.dot(h2.astype(jnp.bfloat16), w1_ref[...],
                preferred_element_type=jnp.float32) + b1_ref[...]
    f = jnp.maximum(f, 0.0)
    f = jnp.dot(f.astype(jnp.bfloat16), w2_ref[...],
                preferred_element_type=jnp.float32) + b2_ref[...]

    o_ref[0] = out1 + f


def rope_block(x, params, n_head):
    B, T, C = x.shape
    hd = C // n_head
    hd2 = hd // 2
    half = C // 2
    scale = 1.0 / math.sqrt(hd)

    # ---- one-time host-side parameter prep ---------------------------------
    # Column permutation interleaved -> grouped half-split layout for q and k:
    #   new col j <  C/2: head h = j // hd2, freq i = j % hd2 -> old col h*hd + 2i
    #   new col j >= C/2: same head/freq                      -> old col h*hd + 2i + 1
    # Same permutation on q and k leaves q_h . k_h^T unchanged but turns
    # rotate_half into one lane roll by C//2 inside the kernel.
    perm = np.empty((C,), np.int32)
    for j in range(half):
        h_, i_ = divmod(j, hd2)
        perm[j] = h_ * hd + 2 * i_
        perm[half + j] = h_ * hd + 2 * i_ + 1
    perm = jnp.asarray(perm)

    w_qkv = params["w_qkv"].astype(jnp.float32)
    b_qkv = params["b_qkv"].astype(jnp.float32)
    w_q = jnp.take(w_qkv[:, :C], perm, axis=1) * scale     # fold 1/sqrt(hd) into q
    w_k = jnp.take(w_qkv[:, C:2 * C], perm, axis=1)
    w_v = w_qkv[:, 2 * C:]
    b_q = jnp.take(b_qkv[:, :C], perm, axis=1) * scale
    b_k = jnp.take(b_qkv[:, C:2 * C], perm, axis=1)
    b_v = b_qkv[:, 2 * C:]
    w_qkv_p = jnp.concatenate([w_q, w_k, w_v], axis=1).astype(jnp.bfloat16)
    b_qkv_p = jnp.concatenate([b_q, b_k, b_v], axis=1)      # stays f32

    # RoPE tables in the grouped layout (theta=10000, lucidrains defaults).
    inv_freq = 1.0 / (10000.0 ** (np.arange(0, hd, 2, dtype=np.float32) / hd))
    ang = np.arange(T, dtype=np.float32)[:, None] * inv_freq[None, :]   # (T, hd/2)
    cos_h, sin_h = np.cos(ang), np.sin(ang)
    cos_t = jnp.asarray(np.tile(cos_h, (1, 2 * n_head)))                # (T, C)
    sins_t = jnp.asarray(np.concatenate([-np.tile(sin_h, (1, n_head)),
                                         np.tile(sin_h, (1, n_head))], axis=1))

    ops = [params["ln1_g"], params["ln1_b"],
           w_qkv_p, b_qkv_p,
           params["w_proj"].astype(jnp.bfloat16), params["b_proj"],
           params["ln2_g"], params["ln2_b"],
           params["w_fc1"].astype(jnp.bfloat16), params["b_fc1"],
           params["w_fc2"].astype(jnp.bfloat16), params["b_fc2"],
           cos_t, sins_t]

    # Grid-invariant operands (weights/tables) use constant index maps; Pallas
    # does not re-fetch blocks whose index is unchanged.  For large C/T the next
    # step is pl.Buffered(1) single-buffering + K/T-tiled matmul grid axes.
    def const_spec(a):
        nd = a.ndim
        return pl.BlockSpec(a.shape, lambda b, _nd=nd: (0,) * _nd)

    kernel = functools.partial(_rope_block_kernel, n_head)
    return pl.pallas_call(
        kernel,
        out_shape=jax.ShapeDtypeStruct((B, T, C), jnp.float32),
        grid=(B,),
        in_specs=[pl.BlockSpec((1, T, C), lambda b: (b, 0, 0))]
                 + [const_spec(a) for a in ops],
        out_specs=pl.BlockSpec((1, T, C), lambda b: (b, 0, 0)),
        scratch_shapes=[pltpu.VMEM((T, C), jnp.float32)],
        compiler_params=pltpu.CompilerParams(
            dimension_semantics=("parallel",),          # megacore sharding on v7x
            vmem_limit_bytes=48 * 1024 * 1024),
    )(x, *ops)


def reference(x, params, n_head):
    """Pure-JAX f32 replica of the PyTorch forward (spec semantics)."""
    B, T, C = x.shape
    hd = C // n_head

    def ln(v, g, b):
        mu = v.mean(-1, keepdims=True)
        var = ((v - mu) ** 2).mean(-1, keepdims=True)
        return (v - mu) * jax.lax.rsqrt(var + 1e-5) * g + b

    h = ln(x, params["ln1_g"], params["ln1_b"])
    qkv = h @ params["w_qkv"] + params["b_qkv"]
    q, k, v = jnp.split(qkv, 3, axis=-1)
    to_heads = lambda t: t.reshape(B, T, n_head, hd).transpose(0, 2, 1, 3)
    q, k, v = map(to_heads, (q, k, v))

    inv_freq = 1.0 / (10000.0 ** (jnp.arange(0, hd, 2, dtype=jnp.float32) / hd))
    ang = jnp.repeat(jnp.arange(T, dtype=jnp.float32)[:, None] * inv_freq[None, :], 2, -1)
    cos, sin = jnp.cos(ang), jnp.sin(ang)

    def rot_half(t):
        tr = t.reshape(*t.shape[:-1], hd // 2, 2)
        return jnp.stack([-tr[..., 1], tr[..., 0]], -1).reshape(t.shape)

    q = q * cos + rot_half(q) * sin
    k = k * cos + rot_half(k) * sin

    mask = jnp.tril(jnp.ones((T, T), jnp.float32))
    att = q @ k.transpose(0, 1, 3, 2) * (1.0 / math.sqrt(hd)) + mask   # float mask ADDED
    att = jax.nn.softmax(att, -1)
    y = (att @ v).transpose(0, 2, 1, 3).reshape(B, T, C)
    y = y @ params["w_proj"] + params["b_proj"]

    out1 = x + y
    h2 = ln(out1, params["ln2_g"], params["ln2_b"])
    f = jnp.maximum(h2 @ params["w_fc1"] + params["b_fc1"], 0.0)
    f = f @ params["w_fc2"] + params["b_fc2"]
    return out1 + f


if __name__ == "__main__":
    B, T, C, NH = 2, 16, 128, 4    # batch, seq, n_embd, n_head (block_size >= T)

    key = jax.random.PRNGKey(0)
    ks = jax.random.split(key, 10)

    def rnd(k, shape, s=0.02):
        return s * jax.random.normal(k, shape, dtype=jnp.float32)

    params = {
        "ln1_g": jnp.ones((1, C), jnp.float32),
        "ln1_b": jnp.zeros((1, C), jnp.float32),
        "w_qkv": rnd(ks[0], (C, 3 * C)),
        "b_qkv": rnd(ks[1], (1, 3 * C)),
        "w_proj": rnd(ks[2], (C, C)),
        "b_proj": rnd(ks[3], (1, C)),
        "ln2_g": jnp.ones((1, C), jnp.float32),
        "ln2_b": jnp.zeros((1, C), jnp.float32),
        "w_fc1": rnd(ks[4], (C, 4 * C)),
        "b_fc1": rnd(ks[5], (1, 4 * C)),
        "w_fc2": rnd(ks[6], (4 * C, C)),
        "b_fc2": rnd(ks[7], (1, C)),
    }
    x = jax.random.normal(ks[8], (B, T, C), dtype=jnp.float32)

    out = jax.block_until_ready(rope_block(x, params, NH))
    ref = jax.block_until_ready(reference(x, params, NH))

    assert out.shape == (B, T, C) and out.dtype == jnp.float32
    # kernel runs bf16 MXU matmuls with f32 accumulation -> compare against the
    # f32 reference with a bf16-appropriate tolerance.
    np.testing.assert_allclose(np.asarray(out), np.asarray(ref), rtol=2e-2, atol=2e-2)
    print("KERNEL_OK")
</pallas_src>

<mosaic_0001>
module attributes {stable_mosaic.version = 11 : i64} {
  func.func @_rope_block_kernel(%arg0: i32, %arg1: memref<1x16x128xf32, #tpu.memory_space<vmem>>, %arg2: memref<1x128xf32, #tpu.memory_space<vmem>>, %arg3: memref<1x128xf32, #tpu.memory_space<vmem>>, %arg4: memref<128x384xbf16, #tpu.memory_space<vmem>>, %arg5: memref<1x384xf32, #tpu.memory_space<vmem>>, %arg6: memref<128x128xbf16, #tpu.memory_space<vmem>>, %arg7: memref<1x128xf32, #tpu.memory_space<vmem>>, %arg8: memref<1x128xf32, #tpu.memory_space<vmem>>, %arg9: memref<1x128xf32, #tpu.memory_space<vmem>>, %arg10: memref<128x512xbf16, #tpu.memory_space<vmem>>, %arg11: memref<1x512xf32, #tpu.memory_space<vmem>>, %arg12: memref<512x128xbf16, #tpu.memory_space<vmem>>, %arg13: memref<1x128xf32, #tpu.memory_space<vmem>>, %arg14: memref<16x128xf32, #tpu.memory_space<vmem>>, %arg15: memref<16x128xf32, #tpu.memory_space<vmem>>, %arg16: memref<1x16x128xf32, #tpu.memory_space<vmem>>, %arg17: memref<16x128xf32, #tpu.memory_space<vmem>>) attributes {dimension_semantics = [#tpu.dimension_semantics<parallel>], iteration_bounds = array<i64: 2>, scalar_prefetch = 0 : i64, scratch_operands = 1 : i64, tpu.core_type = #tpu.core_type<tc>, window_params = [{transform_indices = @transform_0, window_bounds = array<i64: 1, 16, 128>}, {pipeline_mode = #tpu.pipeline_mode<synchronous>, transform_indices = @transform_1, window_bounds = array<i64: 1, 128>}, {pipeline_mode = #tpu.pipeline_mode<synchronous>, transform_indices = @transform_2, window_bounds = array<i64: 1, 128>}, {pipeline_mode = #tpu.pipeline_mode<synchronous>, transform_indices = @transform_3, window_bounds = array<i64: 128, 384>}, {pipeline_mode = #tpu.pipeline_mode<synchronous>, transform_indices = @transform_4, window_bounds = array<i64: 1, 384>}, {pipeline_mode = #tpu.pipeline_mode<synchronous>, transform_indices = @transform_5, window_bounds = array<i64: 128, 128>}, {pipeline_mode = #tpu.pipeline_mode<synchronous>, transform_indices = @transform_6, window_bounds = array<i64: 1, 128>}, {pipeline_mode = #tpu.pipeline_mode<synchronous>, transform_indices = @transform_7, window_bounds = array<i64: 1, 128>}, {pipeline_mode = #tpu.pipeline_mode<synchronous>, transform_indices = @transform_8, window_bounds = array<i64: 1, 128>}, {pipeline_mode = #tpu.pipeline_mode<synchronous>, transform_indices = @transform_9, window_bounds = array<i64: 128, 512>}, {pipeline_mode = #tpu.pipeline_mode<synchronous>, transform_indices = @transform_10, window_bounds = array<i64: 1, 512>}, {pipeline_mode = #tpu.pipeline_mode<synchronous>, transform_indices = @transform_11, window_bounds = array<i64: 512, 128>}, {pipeline_mode = #tpu.pipeline_mode<synchronous>, transform_indices = @transform_12, window_bounds = array<i64: 1, 128>}, {pipeline_mode = #tpu.pipeline_mode<synchronous>, transform_indices = @transform_13, window_bounds = array<i64: 16, 128>}, {pipeline_mode = #tpu.pipeline_mode<synchronous>, transform_indices = @transform_14, window_bounds = array<i64: 16, 128>}, {transform_indices = @transform_15, window_bounds = array<i64: 1, 16, 128>}]} {
    %c0 = arith.constant 0 : index
    %c0_0 = arith.constant 0 : index
    %c0_1 = arith.constant 0 : index
    %0 = vector.load %arg1[%c0, %c0_0, %c0_1] : memref<1x16x128xf32, #tpu.memory_space<vmem>>, vector<1x16x128xf32>
    %1 = vector.shape_cast %0 : vector<1x16x128xf32> to vector<16x128xf32>
    %c0_2 = arith.constant 0 : index
    %c0_3 = arith.constant 0 : index
    %2 = vector.load %arg14[%c0_2, %c0_3] : memref<16x128xf32, #tpu.memory_space<vmem>>, vector<16x128xf32>
    %c0_4 = arith.constant 0 : index
    %c0_5 = arith.constant 0 : index
    %3 = vector.load %arg15[%c0_4, %c0_5] : memref<16x128xf32, #tpu.memory_space<vmem>>, vector<16x128xf32>
    %4 = tpu.iota {dimensions = array<i32: 0>} : vector<16x16xi32>
    %5 = tpu.iota {dimensions = array<i32: 1>} : vector<16x16xi32>
    %6 = arith.cmpi sge, %4, %5 : vector<16x16xi32>
    %7 = arith.extui %6 : vector<16x16xi1> to vector<16x16xi32>
    %8 = arith.sitofp %7 : vector<16x16xi32> to vector<16x16xf32>
    %c0_6 = arith.constant 0 : index
    %c0_7 = arith.constant 0 : index
    %9 = vector.load %arg2[%c0_6, %c0_7] : memref<1x128xf32, #tpu.memory_space<vmem>>, vector<1x128xf32>
    %c0_8 = arith.constant 0 : index
    %c0_9 = arith.constant 0 : index
    %10 = vector.load %arg3[%c0_8, %c0_9] : memref<1x128xf32, #tpu.memory_space<vmem>>, vector<1x128xf32>
    %cst = arith.constant dense<0.000000e+00> : vector<16xf32>
    %11 = vector.multi_reduction <add>, %1, %cst [1] : vector<16x128xf32> to vector<16xf32>
    %12 = vector.shape_cast %11 : vector<16xf32> to vector<16x1xf32>
    %cst_10 = arith.constant 1.280000e+02 : f32
    %13 = vector.broadcast %cst_10 : f32 to vector<16x1xf32>
    %14 = arith.divf %12, %13 : vector<16x1xf32>
    %15 = vector.broadcast %14 : vector<16x1xf32> to vector<16x128xf32>
    %16 = arith.subf %1, %15 : vector<16x128xf32>
    %17 = arith.mulf %16, %16 : vector<16x128xf32>
    %cst_11 = arith.constant dense<0.000000e+00> : vector<16xf32>
    %18 = vector.multi_reduction <add>, %17, %cst_11 [1] : vector<16x128xf32> to vector<16xf32>
    %19 = vector.shape_cast %18 : vector<16xf32> to vector<16x1xf32>
    %cst_12 = arith.constant 1.280000e+02 : f32
    %20 = vector.broadcast %cst_12 : f32 to vector<16x1xf32>
    %21 = arith.divf %19, %20 : vector<16x1xf32>
    %22 = vector.broadcast %14 : vector<16x1xf32> to vector<16x128xf32>
    %23 = arith.subf %1, %22 : vector<16x128xf32>
    %cst_13 = arith.constant 9.99999974E-6 : f32
    %24 = vector.broadcast %cst_13 : f32 to vector<16x1xf32>
    %25 = arith.addf %21, %24 : vector<16x1xf32>
    %26 = math.rsqrt %25 : vector<16x1xf32>
    %27 = vector.broadcast %26 : vector<16x1xf32> to vector<16x128xf32>
    %28 = arith.mulf %23, %27 : vector<16x128xf32>
    %29 = vector.broadcast %9 : vector<1x128xf32> to vector<16x128xf32>
    %30 = arith.mulf %28, %29 : vector<16x128xf32>
    %31 = vector.broadcast %10 : vector<1x128xf32> to vector<16x128xf32>
    %32 = arith.addf %30, %31 : vector<16x128xf32>
    %33 = arith.truncf %32 : vector<16x128xf32> to vector<16x128xbf16>
    %c0_14 = arith.constant 0 : index
    %c0_15 = arith.constant 0 : index
    %34 = vector.load %arg4[%c0_14, %c0_15] : memref<128x384xbf16, #tpu.memory_space<vmem>>, vector<128x384xbf16>
    %cst_16 = arith.constant dense<0.000000e+00> : vector<16x384xf32>
    %35 = tpu.matmul %33, %34, %cst_16 {dimension_numbers = #tpu.dot_dimension_numbers<[1], [0], [0], [1], [0, 0, 1, 1], [], []>} : vector<16x128xbf16>, vector<128x384xbf16>, vector<16x384xf32> -> vector<16x384xf32>
    %c0_17 = arith.constant 0 : index
    %c0_18 = arith.constant 0 : index
    %36 = vector.load %arg5[%c0_17, %c0_18] : memref<1x384xf32, #tpu.memory_space<vmem>>, vector<1x384xf32>
    %37 = vector.broadcast %36 : vector<1x384xf32> to vector<16x384xf32>
    %38 = arith.addf %35, %37 : vector<16x384xf32>
    %39 = vector.extract_strided_slice %38 {offsets = [0, 0], sizes = [16, 128], strides = [1, 1]} : vector<16x384xf32> to vector<16x128xf32>
    %40 = arith.mulf %39, %2 : vector<16x128xf32>
    %c64_i32 = arith.constant 64 : i32
    %41 = tpu.dynamic_rotate %39 by %c64_i32 dim 1 : vector<16x128xf32>, i32 -> vector<16x128xf32>
    %42 = arith.mulf %41, %3 : vector<16x128xf32>
    %43 = arith.addf %40, %42 : vector<16x128xf32>
    %44 = vector.extract_strided_slice %38 {offsets = [0, 128], sizes = [16, 128], strides = [1, 1]} : vector<16x384xf32> to vector<16x128xf32>
    %45 = arith.mulf %44, %2 : vector<16x128xf32>
    %c64_i32_19 = arith.constant 64 : i32
    %46 = tpu.dynamic_rotate %44 by %c64_i32_19 dim 1 : vector<16x128xf32>, i32 -> vector<16x128xf32>
    %47 = arith.mulf %46, %3 : vector<16x128xf32>
    %48 = arith.addf %45, %47 : vector<16x128xf32>
    %49 = arith.truncf %43 : vector<16x128xf32> to vector<16x128xbf16>
    %50 = arith.truncf %48 : vector<16x128xf32> to vector<16x128xbf16>
    %51 = vector.extract_strided_slice %38 {offsets = [0, 256], sizes = [16, 128], strides = [1, 1]} : vector<16x384xf32> to vector<16x128xf32>
    %52 = arith.truncf %51 : vector<16x128xf32> to vector<16x128xbf16>
    %53 = vector.extract_strided_slice %49 {offsets = [0, 0], sizes = [16, 16], strides = [1, 1]} : vector<16x128xbf16> to vector<16x16xbf16>
    %54 = vector.extract_strided_slice %50 {offsets = [0, 0], sizes = [16, 16], strides = [1, 1]} : vector<16x128xbf16> to vector<16x16xbf16>
    %cst_20 = arith.constant dense<0.000000e+00> : vector<16x16xf32>
    %55 = tpu.matmul %53, %54, %cst_20 {dimension_numbers = #tpu.dot_dimension_numbers<[1], [1], [0], [0], [0, 0, 1, 0], [], []>} : vector<16x16xbf16>, vector<16x16xbf16>, vector<16x16xf32> -> vector<16x16xf32>
    %56 = vector.extract_strided_slice %49 {offsets = [0, 64], sizes = [16, 16], strides = [1, 1]} : vector<16x128xbf16> to vector<16x16xbf16>
    %57 = vector.extract_strided_slice %50 {offsets = [0, 64], sizes = [16, 16], strides = [1, 1]} : vector<16x128xbf16> to vector<16x16xbf16>
    %cst_21 = arith.constant dense<0.000000e+00> : vector<16x16xf32>
    %58 = tpu.matmul %56, %57, %cst_21 {dimension_numbers = #tpu.dot_dimension_numbers<[1], [1], [0], [0], [0, 0, 1, 0], [], []>} : vector<16x16xbf16>, vector<16x16xbf16>, vector<16x16xf32> -> vector<16x16xf32>
    %59 = arith.addf %55, %58 : vector<16x16xf32>
    %60 = arith.addf %59, %8 : vector<16x16xf32>
    %cst_22 = arith.constant dense<0xFF800000> : vector<16xf32>
    %61 = vector.multi_reduction <maximumf>, %60, %cst_22 [1] : vector<16x16xf32> to vector<16xf32>
    %62 = vector.shape_cast %61 : vector<16xf32> to vector<16x1xf32>
    %63 = vector.broadcast %62 : vector<16x1xf32> to vector<16x16xf32>
    %64 = arith.subf %60, %63 : vector<16x16xf32>
    %65 = math.exp %64 : vector<16x16xf32>
    %cst_23 = arith.constant dense<0.000000e+00> : vector<16xf32>
    %66 = vector.multi_reduction <add>, %65, %cst_23 [1] : vector<16x16xf32> to vector<16xf32>
    %67 = vector.shape_cast %66 : vector<16xf32> to vector<16x1xf32>
    %68 = tpu.reciprocal %67 {approx = true} : vector<16x1xf32> -> vector<16x1xf32>
    %69 = vector.broadcast %68 : vector<16x1xf32> to vector<16x16xf32>
    %70 = arith.mulf %65, %69 : vector<16x16xf32>
    %71 = arith.truncf %70 : vector<16x16xf32> to vector<16x16xbf16>
    %72 = vector.extract_strided_slice %52 {offsets = [0, 0], sizes = [16, 32], strides = [1, 1]} : vector<16x128xbf16> to vector<16x32xbf16>
    %cst_24 = arith.constant dense<0.000000e+00> : vector<16x32xf32>
    %73 = tpu.matmul %71, %72, %cst_24 {dimension_numbers = #tpu.dot_dimension_numbers<[1], [0], [0], [1], [0, 0, 1, 1], [], []>} : vector<16x16xbf16>, vector<16x32xbf16>, vector<16x32xf32> -> vector<16x32xf32>
    %c0_25 = arith.constant 0 : index
    %c0_26 = arith.constant 0 : index
    %74 = vector.load %arg17[%c0_25, %c0_26] : memref<16x128xf32, #tpu.memory_space<vmem>>, vector<16x32xf32>
    tpu.vector_store %arg17[%c0_25, %c0_26], %73 {strides = array<i32>} : memref<16x128xf32, #tpu.memory_space<vmem>>, vector<16x32xf32>,
    %75 = vector.extract_strided_slice %49 {offsets = [0, 16], sizes = [16, 16], strides = [1, 1]} : vector<16x128xbf16> to vector<16x16xbf16>
    %76 = vector.extract_strided_slice %50 {offsets = [0, 16], sizes = [16, 16], strides = [1, 1]} : vector<16x128xbf16> to vector<16x16xbf16>
    %cst_27 = arith.constant dense<0.000000e+00> : vector<16x16xf32>
    %77 = tpu.matmul %75, %76, %cst_27 {dimension_numbers = #tpu.dot_dimension_numbers<[1], [1], [0], [0], [0, 0, 1, 0], [], []>} : vector<16x16xbf16>, vector<16x16xbf16>, vector<16x16xf32> -> vector<16x16xf32>
    %78 = vector.extract_strided_slice %49 {offsets = [0, 80], sizes = [16, 16], strides = [1, 1]} : vector<16x128xbf16> to vector<16x16xbf16>
    %79 = vector.extract_strided_slice %50 {offsets = [0, 80], sizes = [16, 16], strides = [1, 1]} : vector<16x128xbf16> to vector<16x16xbf16>
    %cst_28 = arith.constant dense<0.000000e+00> : vector<16x16xf32>
    %80 = tpu.matmul %78, %79, %cst_28 {dimension_numbers = #tpu.dot_dimension_numbers<[1], [1], [0], [0], [0, 0, 1, 0], [], []>} : vector<16x16xbf16>, vector<16x16xbf16>, vector<16x16xf32> -> vector<16x16xf32>
    %81 = arith.addf %77, %80 : vector<16x16xf32>
    %82 = arith.addf %81, %8 : vector<16x16xf32>
    %cst_29 = arith.constant dense<0xFF800000> : vector<16xf32>
    %83 = vector.multi_reduction <maximumf>, %82, %cst_29 [1] : vector<16x16xf32> to vector<16xf32>
    %84 = vector.shape_cast %83 : vector<16xf32> to vector<16x1xf32>
    %85 = vector.broadcast %84 : vector<16x1xf32> to vector<16x16xf32>
    %86 = arith.subf %82, %85 : vector<16x16xf32>
    %87 = math.exp %86 : vector<16x16xf32>
    %cst_30 = arith.constant dense<0.000000e+00> : vector<16xf32>
    %88 = vector.multi_reduction <add>, %87, %cst_30 [1] : vector<16x16xf32> to vector<16xf32>
    %89 = vector.shape_cast %88 : vector<16xf32> to vector<16x1xf32>
    %90 = tpu.reciprocal %89 {approx = true} : vector<16x1xf32> -> vector<16x1xf32>
    %91 = vector.broadcast %90 : vector<16x1xf32> to vector<16x16xf32>
    %92 = arith.mulf %87, %91 : vector<16x16xf32>
    %93 = arith.truncf %92 : vector<16x16xf32> to vector<16x16xbf16>
    %94 = vector.extract_strided_slice %52 {offsets = [0, 32], sizes = [16, 32], strides = [1, 1]} : vector<16x128xbf16> to vector<16x32xbf16>
    %cst_31 = arith.constant dense<0.000000e+00> : vector<16x32xf32>
    %95 = tpu.matmul %93, %94, %cst_31 {dimension_numbers = #tpu.dot_dimension_numbers<[1], [0], [0], [1], [0, 0, 1, 1], [], []>} : vector<16x16xbf16>, vector<16x32xbf16>, vector<16x32xf32> -> vector<16x32xf32>
    %c0_32 = arith.constant 0 : index
    %c32 = arith.constant 32 : index
    %96 = vector.load %arg17[%c0_32, %c32] : memref<16x128xf32, #tpu.memory_space<vmem>>, vector<16x32xf32>
    tpu.vector_store %arg17[%c0_32, %c32], %95 {strides = array<i32>} : memref<16x128xf32, #tpu.memory_space<vmem>>, vector<16x32xf32>,
    %97 = vector.extract_strided_slice %49 {offsets = [0, 32], sizes = [16, 16], strides = [1, 1]} : vector<16x128xbf16> to vector<16x16xbf16>
    %98 = vector.extract_strided_slice %50 {offsets = [0, 32], sizes = [16, 16], strides = [1, 1]} : vector<16x128xbf16> to vector<16x16xbf16>
    %cst_33 = arith.constant dense<0.000000e+00> : vector<16x16xf32>
    %99 = tpu.matmul %97, %98, %cst_33 {dimension_numbers = #tpu.dot_dimension_numbers<[1], [1], [0], [0], [0, 0, 1, 0], [], []>} : vector<16x16xbf16>, vector<16x16xbf16>, vector<16x16xf32> -> vector<16x16xf32>
    %100 = vector.extract_strided_slice %49 {offsets = [0, 96], sizes = [16, 16], strides = [1, 1]} : vector<16x128xbf16> to vector<16x16xbf16>
    %101 = vector.extract_strided_slice %50 {offsets = [0, 96], sizes = [16, 16], strides = [1, 1]} : vector<16x128xbf16> to vector<16x16xbf16>
    %cst_34 = arith.constant dense<0.000000e+00> : vector<16x16xf32>
    %102 = tpu.matmul %100, %101, %cst_34 {dimension_numbers = #tpu.dot_dimension_numbers<[1], [1], [0], [0], [0, 0, 1, 0], [], []>} : vector<16x16xbf16>, vector<16x16xbf16>, vector<16x16xf32> -> vector<16x16xf32>
    %103 = arith.addf %99, %102 : vector<16x16xf32>
    %104 = arith.addf %103, %8 : vector<16x16xf32>
    %cst_35 = arith.constant dense<0xFF800000> : vector<16xf32>
    %105 = vector.multi_reduction <maximumf>, %104, %cst_35 [1] : vector<16x16xf32> to vector<16xf32>
    %106 = vector.shape_cast %105 : vector<16xf32> to vector<16x1xf32>
    %107 = vector.broadcast %106 : vector<16x1xf32> to vector<16x16xf32>
    %108 = arith.subf %104, %107 : vector<16x16xf32>
    %109 = math.exp %108 : vector<16x16xf32>
    %cst_36 = arith.constant dense<0.000000e+00> : vector<16xf32>
    %110 = vector.multi_reduction <add>, %109, %cst_36 [1] : vector<16x16xf32> to vector<16xf32>
    %111 = vector.shape_cast %110 : vector<16xf32> to vector<16x1xf32>
    %112 = tpu.reciprocal %111 {approx = true} : vector<16x1xf32> -> vector<16x1xf32>
    %113 = vector.broadcast %112 : vector<16x1xf32> to vector<16x16xf32>
    %114 = arith.mulf %109, %113 : vector<16x16xf32>
    %115 = arith.truncf %114 : vector<16x16xf32> to vector<16x16xbf16>
    %116 = vector.extract_strided_slice %52 {offsets = [0, 64], sizes = [16, 32], strides = [1, 1]} : vector<16x128xbf16> to vector<16x32xbf16>
    %cst_37 = arith.constant dense<0.000000e+00> : vector<16x32xf32>
    %117 = tpu.matmul %115, %116, %cst_37 {dimension_numbers = #tpu.dot_dimension_numbers<[1], [0], [0], [1], [0, 0, 1, 1], [], []>} : vector<16x16xbf16>, vector<16x32xbf16>, vector<16x32xf32> -> vector<16x32xf32>
    %c0_38 = arith.constant 0 : index
    %c64 = arith.constant 64 : index
    %118 = vector.load %arg17[%c0_38, %c64] : memref<16x128xf32, #tpu.memory_space<vmem>>, vector<16x32xf32>
    tpu.vector_store %arg17[%c0_38, %c64], %117 {strides = array<i32>} : memref<16x128xf32, #tpu.memory_space<vmem>>, vector<16x32xf32>,
    %119 = vector.extract_strided_slice %49 {offsets = [0, 48], sizes = [16, 16], strides = [1, 1]} : vector<16x128xbf16> to vector<16x16xbf16>
    %120 = vector.extract_strided_slice %50 {offsets = [0, 48], sizes = [16, 16], strides = [1, 1]} : vector<16x128xbf16> to vector<16x16xbf16>
    %cst_39 = arith.constant dense<0.000000e+00> : vector<16x16xf32>
    %121 = tpu.matmul %119, %120, %cst_39 {dimension_numbers = #tpu.dot_dimension_numbers<[1], [1], [0], [0], [0, 0, 1, 0], [], []>} : vector<16x16xbf16>, vector<16x16xbf16>, vector<16x16xf32> -> vector<16x16xf32>
    %122 = vector.extract_strided_slice %49 {offsets = [0, 112], sizes = [16, 16], strides = [1, 1]} : vector<16x128xbf16> to vector<16x16xbf16>
    %123 = vector.extract_strided_slice %50 {offsets = [0, 112], sizes = [16, 16], strides = [1, 1]} : vector<16x128xbf16> to vector<16x16xbf16>
    %cst_40 = arith.constant dense<0.000000e+00> : vector<16x16xf32>
    %124 = tpu.matmul %122, %123, %cst_40 {dimension_numbers = #tpu.dot_dimension_numbers<[1], [1], [0], [0], [0, 0, 1, 0], [], []>} : vector<16x16xbf16>, vector<16x16xbf16>, vector<16x16xf32> -> vector<16x16xf32>
    %125 = arith.addf %121, %124 : vector<16x16xf32>
    %126 = arith.addf %125, %8 : vector<16x16xf32>
    %cst_41 = arith.constant dense<0xFF800000> : vector<16xf32>
    %127 = vector.multi_reduction <maximumf>, %126, %cst_41 [1] : vector<16x16xf32> to vector<16xf32>
    %128 = vector.shape_cast %127 : vector<16xf32> to vector<16x1xf32>
    %129 = vector.broadcast %128 : vector<16x1xf32> to vector<16x16xf32>
    %130 = arith.subf %126, %129 : vector<16x16xf32>
    %131 = math.exp %130 : vector<16x16xf32>
    %cst_42 = arith.constant dense<0.000000e+00> : vector<16xf32>
    %132 = vector.multi_reduction <add>, %131, %cst_42 [1] : vector<16x16xf32> to vector<16xf32>
    %133 = vector.shape_cast %132 : vector<16xf32> to vector<16x1xf32>
    %134 = tpu.reciprocal %133 {approx = true} : vector<16x1xf32> -> vector<16x1xf32>
    %135 = vector.broadcast %134 : vector<16x1xf32> to vector<16x16xf32>
    %136 = arith.mulf %131, %135 : vector<16x16xf32>
    %137 = arith.truncf %136 : vector<16x16xf32> to vector<16x16xbf16>
    %138 = vector.extract_strided_slice %52 {offsets = [0, 96], sizes = [16, 32], strides = [1, 1]} : vector<16x128xbf16> to vector<16x32xbf16>
    %cst_43 = arith.constant dense<0.000000e+00> : vector<16x32xf32>
    %139 = tpu.matmul %137, %138, %cst_43 {dimension_numbers = #tpu.dot_dimension_numbers<[1], [0], [0], [1], [0, 0, 1, 1], [], []>} : vector<16x16xbf16>, vector<16x32xbf16>, vector<16x32xf32> -> vector<16x32xf32>
    %c0_44 = arith.constant 0 : index
    %c96 = arith.constant 96 : index
    %140 = vector.load %arg17[%c0_44, %c96] : memref<16x128xf32, #tpu.memory_space<vmem>>, vector<16x32xf32>
    tpu.vector_store %arg17[%c0_44, %c96], %139 {strides = array<i32>} : memref<16x128xf32, #tpu.memory_space<vmem>>, vector<16x32xf32>,
    %c0_45 = arith.constant 0 : index
    %c0_46 = arith.constant 0 : index
    %141 = vector.load %arg17[%c0_45, %c0_46] : memref<16x128xf32, #tpu.memory_space<vmem>>, vector<16x128xf32>
    %142 = arith.truncf %141 : vector<16x128xf32> to vector<16x128xbf16>
    %c0_47 = arith.constant 0 : index
    %c0_48 = arith.constant 0 : index
    %143 = vector.load %arg6[%c0_47, %c0_48] : memref<128x128xbf16, #tpu.memory_space<vmem>>, vector<128x128xbf16>
    %cst_49 = arith.constant dense<0.000000e+00> : vector<16x128xf32>
    %144 = tpu.matmul %142, %143, %cst_49 {dimension_numbers = #tpu.dot_dimension_numbers<[1], [0], [0], [1], [0, 0, 1, 1], [], []>} : vector<16x128xbf16>, vector<128x128xbf16>, vector<16x128xf32> -> vector<16x128xf32>
    %c0_50 = arith.constant 0 : index
    %c0_51 = arith.constant 0 : index
    %145 = vector.load %arg7[%c0_50, %c0_51] : memref<1x128xf32, #tpu.memory_space<vmem>>, vector<1x128xf32>
    %146 = vector.broadcast %145 : vector<1x128xf32> to vector<16x128xf32>
    %147 = arith.addf %144, %146 : vector<16x128xf32>
    %148 = arith.addf %1, %147 : vector<16x128xf32>
    %c0_52 = arith.constant 0 : index
    %c0_53 = arith.constant 0 : index
    %149 = vector.load %arg8[%c0_52, %c0_53] : memref<1x128xf32, #tpu.memory_space<vmem>>, vector<1x128xf32>
    %c0_54 = arith.constant 0 : index
    %c0_55 = arith.constant 0 : index
    %150 = vector.load %arg9[%c0_54, %c0_55] : memref<1x128xf32, #tpu.memory_space<vmem>>, vector<1x128xf32>
    %cst_56 = arith.constant dense<0.000000e+00> : vector<16xf32>
    %151 = vector.multi_reduction <add>, %148, %cst_56 [1] : vector<16x128xf32> to vector<16xf32>
    %152 = vector.shape_cast %151 : vector<16xf32> to vector<16x1xf32>
    %cst_57 = arith.constant 1.280000e+02 : f32
    %153 = vector.broadcast %cst_57 : f32 to vector<16x1xf32>
    %154 = arith.divf %152, %153 : vector<16x1xf32>
    %155 = vector.broadcast %154 : vector<16x1xf32> to vector<16x128xf32>
    %156 = arith.subf %148, %155 : vector<16x128xf32>
    %157 = arith.mulf %156, %156 : vector<16x128xf32>
    %cst_58 = arith.constant dense<0.000000e+00> : vector<16xf32>
    %158 = vector.multi_reduction <add>, %157, %cst_58 [1] : vector<16x128xf32> to vector<16xf32>
    %159 = vector.shape_cast %158 : vector<16xf32> to vector<16x1xf32>
    %cst_59 = arith.constant 1.280000e+02 : f32
    %160 = vector.broadcast %cst_59 : f32 to vector<16x1xf32>
    %161 = arith.divf %159, %160 : vector<16x1xf32>
    %162 = vector.broadcast %154 : vector<16x1xf32> to vector<16x128xf32>
    %163 = arith.subf %148, %162 : vector<16x128xf32>
    %cst_60 = arith.constant 9.99999974E-6 : f32
    %164 = vector.broadcast %cst_60 : f32 to vector<16x1xf32>
    %165 = arith.addf %161, %164 : vector<16x1xf32>
    %166 = math.rsqrt %165 : vector<16x1xf32>
    %167 = vector.broadcast %166 : vector<16x1xf32> to vector<16x128xf32>
    %168 = arith.mulf %163, %167 : vector<16x128xf32>
    %169 = vector.broadcast %149 : vector<1x128xf32> to vector<16x128xf32>
    %170 = arith.mulf %168, %169 : vector<16x128xf32>
    %171 = vector.broadcast %150 : vector<1x128xf32> to vector<16x128xf32>
    %172 = arith.addf %170, %171 : vector<16x128xf32>
    %173 = arith.truncf %172 : vector<16x128xf32> to vector<16x128xbf16>
    %c0_61 = arith.constant 0 : index
    %c0_62 = arith.constant 0 : index
    %174 = vector.load %arg10[%c0_61, %c0_62] : memref<128x512xbf16, #tpu.memory_space<vmem>>, vector<128x512xbf16>
    %cst_63 = arith.constant dense<0.000000e+00> : vector<16x512xf32>
    %175 = tpu.matmul %173, %174, %cst_63 {dimension_numbers = #tpu.dot_dimension_numbers<[1], [0], [0], [1], [0, 0, 1, 1], [], []>} : vector<16x128xbf16>, vector<128x512xbf16>, vector<16x512xf32> -> vector<16x512xf32>
    %c0_64 = arith.constant 0 : index
    %c0_65 = arith.constant 0 : index
    %176 = vector.load %arg11[%c0_64, %c0_65] : memref<1x512xf32, #tpu.memory_space<vmem>>, vector<1x512xf32>
    %177 = vector.broadcast %176 : vector<1x512xf32> to vector<16x512xf32>
    %178 = arith.addf %175, %177 : vector<16x512xf32>
    %cst_66 = arith.constant 0.000000e+00 : f32
    %179 = vector.broadcast %cst_66 : f32 to vector<16x512xf32>
    %180 = arith.maximumf %178, %179 : vector<16x512xf32>
    %181 = arith.truncf %180 : vector<16x512xf32> to vector<16x512xbf16>
    %c0_67 = arith.constant 0 : index
    %c0_68 = arith.constant 0 : index
    %182 = vector.load %arg12[%c0_67, %c0_68] : memref<512x128xbf16, #tpu.memory_space<vmem>>, vector<512x128xbf16>
    %cst_69 = arith.constant dense<0.000000e+00> : vector<16x128xf32>
    %183 = tpu.matmul %181, %182, %cst_69 {dimension_numbers = #tpu.dot_dimension_numbers<[1], [0], [0], [1], [0, 0, 1, 1], [], []>} : vector<16x512xbf16>, vector<512x128xbf16>, vector<16x128xf32> -> vector<16x128xf32>
    %c0_70 = arith.constant 0 : index
    %c0_71 = arith.constant 0 : index
    %184 = vector.load %arg13[%c0_70, %c0_71] : memref<1x128xf32, #tpu.memory_space<vmem>>, vector<1x128xf32>
    %185 = vector.broadcast %184 : vector<1x128xf32> to vector<16x128xf32>
    %186 = arith.addf %183, %185 : vector<16x128xf32>
    %187 = arith.addf %148, %186 : vector<16x128xf32>
    %c0_72 = arith.constant 0 : index
    %c0_73 = arith.constant 0 : index
    %c0_74 = arith.constant 0 : index
    %188 = vector.load %arg16[%c0_72, %c0_73, %c0_74] : memref<1x16x128xf32, #tpu.memory_space<vmem>>, vector<1x16x128xf32>
    %189 = vector.shape_cast %188 : vector<1x16x128xf32> to vector<16x128xf32>
    %190 = vector.shape_cast %187 : vector<16x128xf32> to vector<1x16x128xf32>
    tpu.vector_store %arg16[%c0_72, %c0_73, %c0_74], %190 {strides = array<i32>} : memref<1x16x128xf32, #tpu.memory_space<vmem>>, vector<1x16x128xf32>,
    return
  }
  func.func @transform_0(%arg0: i32) -> (i32, i32, i32) {
    %c0_i32 = arith.constant 0 : i32
    %c0_i32_0 = arith.constant 0 : i32
    %c0_i32_1 = arith.constant 0 : i32
    return %arg0, %c0_i32, %c0_i32_0 : i32, i32, i32
  }
  func.func @transform_1(%arg0: i32) -> (i32, i32) {
    %c0_i32 = arith.constant 0 : i32
    %c0_i32_0 = arith.constant 0 : i32
    %c0_i32_1 = arith.constant 0 : i32
    return %c0_i32, %c0_i32_0 : i32, i32
  }
  func.func @transform_2(%arg0: i32) -> (i32, i32) {
    %c0_i32 = arith.constant 0 : i32
    %c0_i32_0 = arith.constant 0 : i32
    %c0_i32_1 = arith.constant 0 : i32
    return %c0_i32, %c0_i32_0 : i32, i32
  }
  func.func @transform_3(%arg0: i32) -> (i32, i32) {
    %c0_i32 = arith.constant 0 : i32
    %c0_i32_0 = arith.constant 0 : i32
    %c0_i32_1 = arith.constant 0 : i32
    return %c0_i32, %c0_i32_0 : i32, i32
  }
  func.func @transform_4(%arg0: i32) -> (i32, i32) {
    %c0_i32 = arith.constant 0 : i32
    %c0_i32_0 = arith.constant 0 : i32
    %c0_i32_1 = arith.constant 0 : i32
    return %c0_i32, %c0_i32_0 : i32, i32
  }
  func.func @transform_5(%arg0: i32) -> (i32, i32) {
    %c0_i32 = arith.constant 0 : i32
    %c0_i32_0 = arith.constant 0 : i32
    %c0_i32_1 = arith.constant 0 : i32
    return %c0_i32, %c0_i32_0 : i32, i32
  }
  func.func @transform_6(%arg0: i32) -> (i32, i32) {
    %c0_i32 = arith.constant 0 : i32
    %c0_i32_0 = arith.constant 0 : i32
    %c0_i32_1 = arith.constant 0 : i32
    return %c0_i32, %c0_i32_0 : i32, i32
  }
  func.func @transform_7(%arg0: i32) -> (i32, i32) {
    %c0_i32 = arith.constant 0 : i32
    %c0_i32_0 = arith.constant 0 : i32
    %c0_i32_1 = arith.constant 0 : i32
    return %c0_i32, %c0_i32_0 : i32, i32
  }
  func.func @transform_8(%arg0: i32) -> (i32, i32) {
    %c0_i32 = arith.constant 0 : i32
    %c0_i32_0 = arith.constant 0 : i32
    %c0_i32_1 = arith.constant 0 : i32
    return %c0_i32, %c0_i32_0 : i32, i32
  }
  func.func @transform_9(%arg0: i32) -> (i32, i32) {
    %c0_i32 = arith.constant 0 : i32
    %c0_i32_0 = arith.constant 0 : i32
    %c0_i32_1 = arith.constant 0 : i32
    return %c0_i32, %c0_i32_0 : i32, i32
  }
  func.func @transform_10(%arg0: i32) -> (i32, i32) {
    %c0_i32 = arith.constant 0 : i32
    %c0_i32_0 = arith.constant 0 : i32
    %c0_i32_1 = arith.constant 0 : i32
    return %c0_i32, %c0_i32_0 : i32, i32
  }
  func.func @transform_11(%arg0: i32) -> (i32, i32) {
    %c0_i32 = arith.constant 0 : i32
    %c0_i32_0 = arith.constant 0 : i32
    %c0_i32_1 = arith.constant 0 : i32
    return %c0_i32, %c0_i32_0 : i32, i32
  }
  func.func @transform_12(%arg0: i32) -> (i32, i32) {
    %c0_i32 = arith.constant 0 : i32
    %c0_i32_0 = arith.constant 0 : i32
    %c0_i32_1 = arith.constant 0 : i32
    return %c0_i32, %c0_i32_0 : i32, i32
  }
  func.func @transform_13(%arg0: i32) -> (i32, i32) {
    %c0_i32 = arith.constant 0 : i32
    %c0_i32_0 = arith.constant 0 : i32
    %c0_i32_1 = arith.constant 0 : i32
    return %c0_i32, %c0_i32_0 : i32, i32
  }
  func.func @transform_14(%arg0: i32) -> (i32, i32) {
    %c0_i32 = arith.constant 0 : i32
    %c0_i32_0 = arith.constant 0 : i32
    %c0_i32_1 = arith.constant 0 : i32
    return %c0_i32, %c0_i32_0 : i32, i32
  }
  func.func @transform_15(%arg0: i32) -> (i32, i32, i32) {
    %c0_i32 = arith.constant 0 : i32
    %c0_i32_0 = arith.constant 0 : i32
    %c0_i32_1 = arith.constant 0 : i32
    return %arg0, %c0_i32, %c0_i32_0 : i32, i32, i32
  }
}

</mosaic_0001>

<llo_original>
// kernel: tpu_custom_call.1
$region0: #{tpu_custom_call.1}
  #allocation0 [shape = 'u32[]', space=smem, size = 0x4, offset = 0x4, fixed_abs, tag = 'smem constant byte address 0x4 - core index']
  #allocation1 [shape = 'u32[144,128]{1,0:T(1,128)}', space=vmem, size = 0x12000, scoped, tag = 'internal scratch']
  #allocation2 [shape = 'f32[16,128]{1,0:T(8,128)}', space=vmem, size = 0x2000, scoped, tag = 'scratch operand']
  %s0 = inlined_call_operand.hbm [shape: f32[2,16,128], index: 0, kind: input, shape index: {}]
  %s1 = inlined_call_operand.hbm [shape: f32[1,128], index: 1, kind: input, shape index: {}]
  %s2 = inlined_call_operand.hbm [shape: f32[1,128], index: 2, kind: input, shape index: {}]
  %s3 = inlined_call_operand.hbm [shape: bf16[128,384], index: 3, kind: input, shape index: {}]
  %s4 = inlined_call_operand.vmem [shape: f32[1,384], index: 4, kind: input, shape index: {}]
  %s5 = inlined_call_operand.hbm [shape: bf16[128,128], index: 5, kind: input, shape index: {}]
  %s6 = inlined_call_operand.hbm [shape: f32[1,128], index: 6, kind: input, shape index: {}]
  %s7 = inlined_call_operand.hbm [shape: f32[1,128], index: 7, kind: input, shape index: {}]
  %s8 = inlined_call_operand.hbm [shape: f32[1,128], index: 8, kind: input, shape index: {}]
  %s9 = inlined_call_operand.hbm [shape: bf16[128,512], index: 9, kind: input, shape index: {}]
  %s10 = inlined_call_operand.vmem [shape: f32[1,512], index: 10, kind: input, shape index: {}]
  %s11 = inlined_call_operand.hbm [shape: bf16[512,128], index: 11, kind: input, shape index: {}]
  %s12 = inlined_call_operand.hbm [shape: f32[1,128], index: 12, kind: input, shape index: {}]
  %s13 = inlined_call_operand.vmem [shape: f32[16,128], index: 13, kind: input, shape index: {}]
  %s14 = inlined_call_operand.hbm [shape: f32[16,128], index: 14, kind: input, shape index: {}]
  %s15 = inlined_call_operand.hbm [shape: f32[2,16,128], index: 15, kind: output, shape index: {}]
  %s16 = sld [smem:[#allocation0]]
  $region141: #{tpu_custom_call.1} parent=0
    _
  %s18 = ssub.s32 1, %s16
  %s19 = scalar_select 0, %s18, %s16
  $region1: #{tpu_custom_call.1} parent=0
    #allocation3 [shape = 'u8[16384]{0}', space=vmem, size = 0x4000, scoped, tag = 'input window, operand 0']
    #allocation4 [shape = 's32[2]{0}', space=sflag, size = 0x8, scoped, tag = 'scoped memory for tpu_custom_call.1']
    #allocation5 [shape = 's32[2]{0}', space=sflag, size = 0x8, scoped, tag = 'scoped memory for tpu_custom_call.1']
    #allocation6 [shape = 'u8[512]{0}', space=vmem, size = 0x400, scoped, tag = 'input window, operand 1, single buffered']
    #allocation7 [shape = 's32[1]{0}', space=sflag, size = 0x4, scoped, tag = 'scoped memory for tpu_custom_call.1']
    #allocation8 [shape = 'u8[512]{0}', space=vmem, size = 0x400, scoped, tag = 'input window, operand 2, single buffered']
    #allocation9 [shape = 'u8[98304]{0}', space=vmem, size = 0x18000, scoped, tag = 'input window, operand 3, single buffered']
    #allocation10 [shape = 's32[1]{0}', space=sflag, size = 0x4, scoped, tag = 'scoped memory for tpu_custom_call.1']
    #allocation11 [shape = 'u8[32768]{0}', space=vmem, size = 0x8000, scoped, tag = 'input window, operand 5, single buffered']
    #allocation12 [shape = 'u8[512]{0}', space=vmem, size = 0x400, scoped, tag = 'input window, operand 6, single buffered']
    #allocation13 [shape = 's32[1]{0}', space=sflag, size = 0x4, scoped, tag = 'scoped memory for tpu_custom_call.1']
    #allocation14 [shape = 'u8[512]{0}', space=vmem, size = 0x400, scoped, tag = 'input window, operand 7, single buffered']
    #allocation15 [shape = 'u8[512]{0}', space=vmem, size = 0x400, scoped, tag = 'input window, operand 8, single buffered']
    #allocation16 [shape = 's32[1]{0}', space=sflag, size = 0x4, scoped, tag = 'scoped memory for tpu_custom_call.1']
    #allocation17 [shape = 'u8[131072]{0}', space=vmem, size = 0x20000, scoped, tag = 'input window, operand 9, single buffered']
    #allocation18 [shape = 'u8[131072]{0}', space=vmem, size = 0x20000, scoped, tag = 'input window, operand 11, single buffered']
    #allocation19 [shape = 's32[1]{0}', space=sflag, size = 0x4, scoped, tag = 'scoped memory for tpu_custom_call.1']
    #allocation20 [shape = 'u8[512]{0}', space=vmem, size = 0x400, scoped, tag = 'input window, operand 12, single buffered']
    #allocation21 [shape = 'u8[8192]{0}', space=vmem, size = 0x2000, scoped, tag = 'input window, operand 14, single buffered']
    #allocation22 [shape = 's32[1]{0}', space=sflag, size = 0x4, scoped, tag = 'scoped memory for tpu_custom_call.1']
    #allocation23 [shape = 'u8[16384]{0}', space=vmem, size = 0x4000, scoped, tag = 'output window, operand 0']
    %20 = vsyncpa [#allocation4], 0
    %s21 = scalar_lea.sflag [#allocation4], 1
    %22 = vsyncpa %s21, 0
    %23 = vsyncpa [#allocation7], 0
    %24 = vsyncpa [#allocation10], 0
    %25 = vsyncpa [#allocation13], 0
    %26 = vsyncpa [#allocation16], 0
    %27 = vsyncpa [#allocation19], 0
    %28 = vsyncpa [#allocation22], 0
    %29 = vsyncpa [#allocation5], 0
    %s30 = scalar_lea.sflag [#allocation5], 1
    %31 = vsyncpa %s30, 0
    loop: start=0, step=1, limit=4
    $region2: #{tpu_custom_call.1} parent=1 // loop_pre_header
      _
    $region3: #{tpu_custom_call.1} parent=1 // loop_header
      %s33 = sphi 0, %s37
      %p34 = scmp.ge.s32.totalorder %s33, 4
      %s43 = sphi 0, %s45
      %s46 = sphi 0, %s43
      %s47 = sphi 0, %s46
      %s63 = sphi 0, %s47
      %s67 = sphi 0, %s67
      %s69 = sphi 0, %s67
      %s70 = sphi 0, %s69
      %s84 = sphi 0, %s70
      %s88 = sphi 0, %s88
      %s90 = sphi 0, %s88
      %s91 = sphi 0, %s90
      %s105 = sphi 0, %s91
      %s109 = sphi 0, %s109
      %s111 = sphi 0, %s109
      %s112 = sphi 0, %s111
      %s126 = sphi 0, %s112
      %s130 = sphi 0, %s130
      %s132 = sphi 0, %s130
      %s133 = sphi 0, %s132
      %s147 = sphi 0, %s133
      %s151 = sphi 0, %s151
      %s153 = sphi 0, %s151
      %s154 = sphi 0, %s153
      %s168 = sphi 0, %s154
      %s172 = sphi 0, %s172
      %s174 = sphi 0, %s172
      %s175 = sphi 0, %s174
      %s189 = sphi 0, %s175
      %s193 = sphi 0, %s193
      %s195 = sphi 0, %s193
      %s196 = sphi 0, %s195
      %s210 = sphi 0, %s196
      %s214 = sphi 0, %s214
      %s216 = sphi 0, %s214
      %s217 = sphi 0, %s216
      %s231 = sphi 0, %s217
      %s235 = sphi 0, %s235
      %s237 = sphi 0, %s235
      %s238 = sphi 0, %s237
      %s252 = sphi 0, %s238
      %s256 = sphi 0, %s256
      %s258 = sphi 0, %s256
      %s259 = sphi 0, %s258
      %s273 = sphi 0, %s259
      %s277 = sphi 0, %s277
      %s279 = sphi 0, %s277
      %s280 = sphi 0, %s279
      %s294 = sphi 0, %s280
      %s298 = sphi 0, %s298
      %s300 = sphi 0, %s298
      %s301 = sphi 0, %s300
      %s315 = sphi 0, %s301
      %s319 = sphi 0, %s319
      %s321 = sphi 0, %s319
      %s322 = sphi 0, %s321
      %s336 = sphi 0, %s322
      %s340 = sphi 0, %s340
      %s342 = sphi 0, %s340
      %s343 = sphi 0, %s342
      %s357 = sphi 0, %s343
      %s363 = sphi 0, %s365
      %s366 = sphi 0, %s363
      %s367 = sphi 0, %s366
      %s383 = sphi 0, %s367
    $region4: #{tpu_custom_call.1} parent=1 // loop_header_branch
      %36 = sbr.rel (%p34) target = $region8
    $region5: #{tpu_custom_call.1} parent=1 // loop_body
      %s38 = ssub.s32 %s33, 1
      %s39 = ssub.s32 %s33, 2
      %s40 = sadd.s32 %s33, 1
      %s41 = ssub.s32 %s33, %s40
      %p42 = scmp.eq.s32.totalorder %s41, 0
      %s44 = sadd.s32 %s43, 1
      %s45 = scalar_select %p42, %s43, %s44
      %p48 = pneg %p42
      %p49 = scmp.eq.s32.totalorder %s33, 1
      %p50 = por %p48, %p49
      %p51 = scmp.ne.s32.totalorder %s43, %s46
      %p52 = scmp.eq.s32.totalorder %s33, 0
      %p53 = por %p51, %p52
      %p54 = scmp.ne.s32.totalorder %s43, %s46
      %p55 = scmp.eq.s32.totalorder %s38, 1
      %p56 = por %p54, %p55
      %p57 = scmp.ne.s32.totalorder %s46, %s47
      %p58 = scmp.eq.s32.totalorder %s38, 0
      %p59 = por %p57, %p58
      %p60 = scmp.ne.s32.totalorder %s46, %s47
      %p61 = scmp.eq.s32.totalorder %s39, 1
      %p62 = por %p60, %p61
      %p64 = scmp.ne.s32.totalorder %s47, %s63
      %p65 = scmp.eq.s32.totalorder %s39, 0
      %p66 = por %p64, %p65
      %s68 = sadd.s32 %s67, 1
      %p71 = scmp.eq.s32.totalorder %s33, 1
      %p72 = scmp.ne.s32.totalorder %s67, %s69
      %p73 = scmp.eq.s32.totalorder %s33, 0
      %p74 = por %p72, %p73
      %p75 = scmp.ne.s32.totalorder %s67, %s69
      %p76 = scmp.eq.s32.totalorder %s38, 1
      %p77 = por %p75, %p76
      %p78 = scmp.ne.s32.totalorder %s69, %s70
      %p79 = scmp.eq.s32.totalorder %s38, 0
      %p80 = por %p78, %p79
      %p81 = scmp.ne.s32.totalorder %s69, %s70
      %p82 = scmp.eq.s32.totalorder %s39, 1
      %p83 = por %p81, %p82
      %p85 = scmp.ne.s32.totalorder %s70, %s84
      %p86 = scmp.eq.s32.totalorder %s39, 0
      %p87 = por %p85, %p86
      %s89 = sadd.s32 %s88, 1
      %p92 = scmp.eq.s32.totalorder %s33, 1
      %p93 = scmp.ne.s32.totalorder %s88, %s90
      %p94 = scmp.eq.s32.totalorder %s33, 0
      %p95 = por %p93, %p94
      %p96 = scmp.ne.s32.totalorder %s88, %s90
      %p97 = scmp.eq.s32.totalorder %s38, 1
      %p98 = por %p96, %p97
      %p99 = scmp.ne.s32.totalorder %s90, %s91
      %p100 = scmp.eq.s32.totalorder %s38, 0
      %p101 = por %p99, %p100
      %p102 = scmp.ne.s32.totalorder %s90, %s91
      %p103 = scmp.eq.s32.totalorder %s39, 1
      %p104 = por %p102, %p103
      %p106 = scmp.ne.s32.totalorder %s91, %s105
      %p107 = scmp.eq.s32.totalorder %s39, 0
      %p108 = por %p106, %p107
      %s110 = sadd.s32 %s109, 1
      %p113 = scmp.eq.s32.totalorder %s33, 1
      %p114 = scmp.ne.s32.totalorder %s109, %s111
      %p115 = scmp.eq.s32.totalorder %s33, 0
      %p116 = por %p114, %p115
      %p117 = scmp.ne.s32.totalorder %s109, %s111
      %p118 = scmp.eq.s32.totalorder %s38, 1
      %p119 = por %p117, %p118
      %p120 = scmp.ne.s32.totalorder %s111, %s112
      %p121 = scmp.eq.s32.totalorder %s38, 0
      %p122 = por %p120, %p121
      %p123 = scmp.ne.s32.totalorder %s111, %s112
      %p124 = scmp.eq.s32.totalorder %s39, 1
      %p125 = por %p123, %p124
      %p127 = scmp.ne.s32.totalorder %s112, %s126
      %p128 = scmp.eq.s32.totalorder %s39, 0
      %p129 = por %p127, %p128
      %s131 = sadd.s32 %s130, 1
      %p134 = scmp.eq.s32.totalorder %s33, 1
      %p135 = scmp.ne.s32.totalorder %s130, %s132
      %p136 = scmp.eq.s32.totalorder %s33, 0
      %p137 = por %p135, %p136
      %p138 = scmp.ne.s32.totalorder %s130, %s132
      %p139 = scmp.eq.s32.totalorder %s38, 1
      %p140 = por %p138, %p139
      %p141 = scmp.ne.s32.totalorder %s132, %s133
      %p142 = scmp.eq.s32.totalorder %s38, 0
      %p143 = por %p141, %p142
      %p144 = scmp.ne.s32.totalorder %s132, %s133
      %p145 = scmp.eq.s32.totalorder %s39, 1
      %p146 = por %p144, %p145
      %p148 = scmp.ne.s32.totalorder %s133, %s147
      %p149 = scmp.eq.s32.totalorder %s39, 0
      %p150 = por %p148, %p149
      %s152 = sadd.s32 %s151, 1
      %p155 = scmp.eq.s32.totalorder %s33, 1
      %p156 = scmp.ne.s32.totalorder %s151, %s153
      %p157 = scmp.eq.s32.totalorder %s33, 0
      %p158 = por %p156, %p157
      %p159 = scmp.ne.s32.totalorder %s151, %s153
      %p160 = scmp.eq.s32.totalorder %s38, 1
      %p161 = por %p159, %p160
      %p162 = scmp.ne.s32.totalorder %s153, %s154
      %p163 = scmp.eq.s32.totalorder %s38, 0
      %p164 = por %p162, %p163
      %p165 = scmp.ne.s32.totalorder %s153, %s154
      %p166 = scmp.eq.s32.totalorder %s39, 1
      %p167 = por %p165, %p166
      %p169 = scmp.ne.s32.totalorder %s154, %s168
      %p170 = scmp.eq.s32.totalorder %s39, 0
      %p171 = por %p169, %p170
      %s173 = sadd.s32 %s172, 1
      %p176 = scmp.eq.s32.totalorder %s33, 1
      %p177 = scmp.ne.s32.totalorder %s172, %s174
      %p178 = scmp.eq.s32.totalorder %s33, 0
      %p179 = por %p177, %p178
      %p180 = scmp.ne.s32.totalorder %s172, %s174
      %p181 = scmp.eq.s32.totalorder %s38, 1
      %p182 = por %p180, %p181
      %p183 = scmp.ne.s32.totalorder %s174, %s175
      %p184 = scmp.eq.s32.totalorder %s38, 0
      %p185 = por %p183, %p184
      %p186 = scmp.ne.s32.totalorder %s174, %s175
      %p187 = scmp.eq.s32.totalorder %s39, 1
      %p188 = por %p186, %p187
      %p190 = scmp.ne.s32.totalorder %s175, %s189
      %p191 = scmp.eq.s32.totalorder %s39, 0
      %p192 = por %p190, %p191
      %s194 = sadd.s32 %s193, 1
      %p197 = scmp.eq.s32.totalorder %s33, 1
      %p198 = scmp.ne.s32.totalorder %s193, %s195
      %p199 = scmp.eq.s32.totalorder %s33, 0
      %p200 = por %p198, %p199
      %p201 = scmp.ne.s32.totalorder %s193, %s195
      %p202 = scmp.eq.s32.totalorder %s38, 1
      %p203 = por %p201, %p202
      %p204 = scmp.ne.s32.totalorder %s195, %s196
      %p205 = scmp.eq.s32.totalorder %s38, 0
      %p206 = por %p204, %p205
      %p207 = scmp.ne.s32.totalorder %s195, %s196
      %p208 = scmp.eq.s32.totalorder %s39, 1
      %p209 = por %p207, %p208
      %p211 = scmp.ne.s32.totalorder %s196, %s210
      %p212 = scmp.eq.s32.totalorder %s39, 0
      %p213 = por %p211, %p212
      %s215 = sadd.s32 %s214, 1
      %p218 = scmp.eq.s32.totalorder %s33, 1
      %p219 = scmp.ne.s32.totalorder %s214, %s216
      %p220 = scmp.eq.s32.totalorder %s33, 0
      %p221 = por %p219, %p220
      %p222 = scmp.ne.s32.totalorder %s214, %s216
      %p223 = scmp.eq.s32.totalorder %s38, 1
      %p224 = por %p222, %p223
      %p225 = scmp.ne.s32.totalorder %s216, %s217
      %p226 = scmp.eq.s32.totalorder %s38, 0
      %p227 = por %p225, %p226
      %p228 = scmp.ne.s32.totalorder %s216, %s217
      %p229 = scmp.eq.s32.totalorder %s39, 1
      %p230 = por %p228, %p229
      %p232 = scmp.ne.s32.totalorder %s217, %s231
      %p233 = scmp.eq.s32.totalorder %s39, 0
      %p234 = por %p232, %p233
      %s236 = sadd.s32 %s235, 1
      %p239 = scmp.eq.s32.totalorder %s33, 1
      %p240 = scmp.ne.s32.totalorder %s235, %s237
      %p241 = scmp.eq.s32.totalorder %s33, 0
      %p242 = por %p240, %p241
      %p243 = scmp.ne.s32.totalorder %s235, %s237
      %p244 = scmp.eq.s32.totalorder %s38, 1
      %p245 = por %p243, %p244
      %p246 = scmp.ne.s32.totalorder %s237, %s238
      %p247 = scmp.eq.s32.totalorder %s38, 0
      %p248 = por %p246, %p247
      %p249 = scmp.ne.s32.totalorder %s237, %s238
      %p250 = scmp.eq.s32.totalorder %s39, 1
      %p251 = por %p249, %p250
      %p253 = scmp.ne.s32.totalorder %s238, %s252
      %p254 = scmp.eq.s32.totalorder %s39, 0
      %p255 = por %p253, %p254
      %s257 = sadd.s32 %s256, 1
      %p260 = scmp.eq.s32.totalorder %s33, 1
      %p261 = scmp.ne.s32.totalorder %s256, %s258
      %p262 = scmp.eq.s32.totalorder %s33, 0
      %p263 = por %p261, %p262
      %p264 = scmp.ne.s32.totalorder %s256, %s258
      %p265 = scmp.eq.s32.totalorder %s38, 1
      %p266 = por %p264, %p265
      %p267 = scmp.ne.s32.totalorder %s258, %s259
      %p268 = scmp.eq.s32.totalorder %s38, 0
      %p269 = por %p267, %p268
      %p270 = scmp.ne.s32.totalorder %s258, %s259
      %p271 = scmp.eq.s32.totalorder %s39, 1
      %p272 = por %p270, %p271
      %p274 = scmp.ne.s32.totalorder %s259, %s273
      %p275 = scmp.eq.s32.totalorder %s39, 0
      %p276 = por %p274, %p275
      %s278 = sadd.s32 %s277, 1
      %p281 = scmp.eq.s32.totalorder %s33, 1
      %p282 = scmp.ne.s32.totalorder %s277, %s279
      %p283 = scmp.eq.s32.totalorder %s33, 0
      %p284 = por %p282, %p283
      %p285 = scmp.ne.s32.totalorder %s277, %s279
      %p286 = scmp.eq.s32.totalorder %s38, 1
      %p287 = por %p285, %p286
      %p288 = scmp.ne.s32.totalorder %s279, %s280
      %p289 = scmp.eq.s32.totalorder %s38, 0
      %p290 = por %p288, %p289
      %p291 = scmp.ne.s32.totalorder %s279, %s280
      %p292 = scmp.eq.s32.totalorder %s39, 1
      %p293 = por %p291, %p292
      %p295 = scmp.ne.s32.totalorder %s280, %s294
      %p296 = scmp.eq.s32.totalorder %s39, 0
      %p297 = por %p295, %p296
      %s299 = sadd.s32 %s298, 1
      %p302 = scmp.eq.s32.totalorder %s33, 1
      %p303 = scmp.ne.s32.totalorder %s298, %s300
      %p304 = scmp.eq.s32.totalorder %s33, 0
      %p305 = por %p303, %p304
      %p306 = scmp.ne.s32.totalorder %s298, %s300
      %p307 = scmp.eq.s32.totalorder %s38, 1
      %p308 = por %p306, %p307
      %p309 = scmp.ne.s32.totalorder %s300, %s301
      %p310 = scmp.eq.s32.totalorder %s38, 0
      %p311 = por %p309, %p310
      %p312 = scmp.ne.s32.totalorder %s300, %s301
      %p313 = scmp.eq.s32.totalorder %s39, 1
      %p314 = por %p312, %p313
      %p316 = scmp.ne.s32.totalorder %s301, %s315
      %p317 = scmp.eq.s32.totalorder %s39, 0
      %p318 = por %p316, %p317
      %s320 = sadd.s32 %s319, 1
      %p323 = scmp.eq.s32.totalorder %s33, 1
      %p324 = scmp.ne.s32.totalorder %s319, %s321
      %p325 = scmp.eq.s32.totalorder %s33, 0
      %p326 = por %p324, %p325
      %p327 = scmp.ne.s32.totalorder %s319, %s321
      %p328 = scmp.eq.s32.totalorder %s38, 1
      %p329 = por %p327, %p328
      %p330 = scmp.ne.s32.totalorder %s321, %s322
      %p331 = scmp.eq.s32.totalorder %s38, 0
      %p332 = por %p330, %p331
      %p333 = scmp.ne.s32.totalorder %s321, %s322
      %p334 = scmp.eq.s32.totalorder %s39, 1
      %p335 = por %p333, %p334
      %p337 = scmp.ne.s32.totalorder %s322, %s336
      %p338 = scmp.eq.s32.totalorder %s39, 0
      %p339 = por %p337, %p338
      %s341 = sadd.s32 %s340, 1
      %p344 = scmp.eq.s32.totalorder %s33, 1
      %p345 = scmp.ne.s32.totalorder %s340, %s342
      %p346 = scmp.eq.s32.totalorder %s33, 0
      %p347 = por %p345, %p346
      %p348 = scmp.ne.s32.totalorder %s340, %s342
      %p349 = scmp.eq.s32.totalorder %s38, 1
      %p350 = por %p348, %p349
      %p351 = scmp.ne.s32.totalorder %s342, %s343
      %p352 = scmp.eq.s32.totalorder %s38, 0
      %p353 = por %p351, %p352
      %p354 = scmp.ne.s32.totalorder %s342, %s343
      %p355 = scmp.eq.s32.totalorder %s39, 1
      %p356 = por %p354, %p355
      %p358 = scmp.ne.s32.totalorder %s343, %s357
      %p359 = scmp.eq.s32.totalorder %s39, 0
      %p360 = por %p358, %p359
      %s361 = ssub.s32 %s33, %s40
      %p362 = scmp.eq.s32.totalorder %s361, 0
      %s364 = sadd.s32 %s363, 1
      %s365 = scalar_select %p362, %s363, %s364
      %p368 = pneg %p362
      %p369 = scmp.eq.s32.totalorder %s33, 1
      %p370 = por %p368, %p369
      %p371 = scmp.ne.s32.totalorder %s363, %s366
      %p372 = scmp.eq.s32.totalorder %s33, 0
      %p373 = por %p371, %p372
      %p374 = scmp.ne.s32.totalorder %s363, %s366
      %p375 = scmp.eq.s32.totalorder %s38, 1
      %p376 = por %p374, %p375
      %p377 = scmp.ne.s32.totalorder %s366, %s367
      %p378 = scmp.eq.s32.totalorder %s38, 0
      %p379 = por %p377, %p378
      %p380 = scmp.ne.s32.totalorder %s366, %s367
      %p381 = scmp.eq.s32.totalorder %s39, 1
      %p382 = por %p380, %p381
      %p384 = scmp.ne.s32.totalorder %s367, %s383
      %p385 = scmp.eq.s32.totalorder %s39, 0
      %p386 = por %p384, %p385
      %p387 = scmp.le.s32.totalorder 1, %s33
      %p388 = scmp.lt.s32.totalorder %s33, 3
      %p389 = pnand %p387, %p388
      %p390 = pneg %p389
      // Predicated region
      $region9: #{tpu_custom_call.1} parent=5 // pred_check
        _
      $region10: #{tpu_custom_call.1} parent=5 // pred_check_branch
        %392 = sbr.rel (%p389) target = $region12
      $region11: #{tpu_custom_call.1} parent=5 // pred_region
        %s393 = ssub.s32 %s33, 1
        // Predicated region
        $region13: #{tpu_custom_call.1} parent=11 // pred_check
          %p394 = pneg %p80
        $region14: #{tpu_custom_call.1} parent=11 // pred_check_branch
          %396 = sbr.rel (%p394) target = $region16
        $region15: #{tpu_custom_call.1} parent=11 // pred_region
          %s398 = ssub.s32 16, 16
          %399 = vsyncadd [#allocation7], %s398
          %s401 = sshll.u32 [#allocation6], 4
          %s402 = int_to_ptr.vmem [resolvable:$true] %s401
          %404 = dma.hbm_to_vmem [thread:$0]  %s1, 16, %s402, [#allocation7]
        $region16: #{tpu_custom_call.1} parent=11 // pred_fallthru
          _
        // Predicated region
        $region17: #{tpu_custom_call.1} parent=11 // pred_check
          %p405 = pneg %p101
        $region18: #{tpu_custom_call.1} parent=11 // pred_check_branch
          %407 = sbr.rel (%p405) target = $region20
        $region19: #{tpu_custom_call.1} parent=11 // pred_region
          %s409 = ssub.s32 16, 16
          %410 = vsyncadd [#allocation7], %s409
          %s412 = sshll.u32 [#allocation8], 4
          %s413 = int_to_ptr.vmem [resolvable:$true] %s412
          %415 = dma.hbm_to_vmem [thread:$0]  %s2, 16, %s413, [#allocation7]
        $region20: #{tpu_custom_call.1} parent=11 // pred_fallthru
          _
        // Predicated region
        $region21: #{tpu_custom_call.1} parent=11 // pred_check
          %p416 = pneg %p122
        $region22: #{tpu_custom_call.1} parent=11 // pred_check_branch
          %418 = sbr.rel (%p416) target = $region24
        $region23: #{tpu_custom_call.1} parent=11 // pred_region
          %s420 = ssub.s32 3072, 3072
          %421 = vsyncadd [#allocation10], %s420
          %s422 = sshll.u32 [#allocation9], 4
          %s423 = int_to_ptr.vmem [resolvable:$true] %s422
          %428 = dma.hbm_to_vmem [thread:$0]  %s3, 3072, %s423, [#allocation10], 192, 192, 12
        $region24: #{tpu_custom_call.1} parent=11 // pred_fallthru
          _
        // Predicated region
        $region25: #{tpu_custom_call.1} parent=11 // pred_check
          %p429 = pneg %p143
        $region26: #{tpu_custom_call.1} parent=11 // pred_check_branch
          %431 = sbr.rel (%p429) target = $region28
        $region27: #{tpu_custom_call.1} parent=11 // pred_region
          _
        $region28: #{tpu_custom_call.1} parent=11 // pred_fallthru
          _
        // Predicated region
        $region29: #{tpu_custom_call.1} parent=11 // pred_check
          %p432 = pneg %p164
        $region30: #{tpu_custom_call.1} parent=11 // pred_check_branch
          %434 = sbr.rel (%p432) target = $region32
        $region31: #{tpu_custom_call.1} parent=11 // pred_region
          %s436 = ssub.s32 1024, 1024
          %437 = vsyncadd [#allocation10], %s436
          %s438 = sshll.u32 [#allocation11], 4
          %s439 = int_to_ptr.vmem [resolvable:$true] %s438
          %444 = dma.hbm_to_vmem [thread:$0]  %s5, 1024, %s439, [#allocation10], 64, 64, 4
        $region32: #{tpu_custom_call.1} parent=11 // pred_fallthru
          _
        // Predicated region
        $region33: #{tpu_custom_call.1} parent=11 // pred_check
          %p445 = pneg %p185
        $region34: #{tpu_custom_call.1} parent=11 // pred_check_branch
          %447 = sbr.rel (%p445) target = $region36
        $region35: #{tpu_custom_call.1} parent=11 // pred_region
          %s449 = ssub.s32 16, 16
          %450 = vsyncadd [#allocation13], %s449
          %s452 = sshll.u32 [#allocation12], 4
          %s453 = int_to_ptr.vmem [resolvable:$true] %s452
          %455 = dma.hbm_to_vmem [thread:$0]  %s6, 16, %s453, [#allocation13]
        $region36: #{tpu_custom_call.1} parent=11 // pred_fallthru
          _
        // Predicated region
        $region37: #{tpu_custom_call.1} parent=11 // pred_check
          %p456 = pneg %p206
        $region38: #{tpu_custom_call.1} parent=11 // pred_check_branch
          %458 = sbr.rel (%p456) target = $region40
        $region39: #{tpu_custom_call.1} parent=11 // pred_region
          %s460 = ssub.s32 16, 16
          %461 = vsyncadd [#allocation13], %s460
          %s463 = sshll.u32 [#allocation14], 4
          %s464 = int_to_ptr.vmem [resolvable:$true] %s463
          %466 = dma.hbm_to_vmem [thread:$0]  %s7, 16, %s464, [#allocation13]
        $region40: #{tpu_custom_call.1} parent=11 // pred_fallthru
          _
        // Predicated region
        $region41: #{tpu_custom_call.1} parent=11 // pred_check
          %p467 = pneg %p227
        $region42: #{tpu_custom_call.1} parent=11 // pred_check_branch
          %469 = sbr.rel (%p467) target = $region44
        $region43: #{tpu_custom_call.1} parent=11 // pred_region
          %s471 = ssub.s32 16, 16
          %472 = vsyncadd [#allocation16], %s471
          %s474 = sshll.u32 [#allocation15], 4
          %s475 = int_to_ptr.vmem [resolvable:$true] %s474
          %477 = dma.hbm_to_vmem [thread:$0]  %s8, 16, %s475, [#allocation16]
        $region44: #{tpu_custom_call.1} parent=11 // pred_fallthru
          _
        // Predicated region
        $region45: #{tpu_custom_call.1} parent=11 // pred_check
          %p478 = pneg %p248
        $region46: #{tpu_custom_call.1} parent=11 // pred_check_branch
          %480 = sbr.rel (%p478) target = $region48
        $region47: #{tpu_custom_call.1} parent=11 // pred_region
          %s482 = ssub.s32 4096, 4096
          %483 = vsyncadd [#allocation16], %s482
          %s484 = sshll.u32 [#allocation17], 4
          %s485 = int_to_ptr.vmem [resolvable:$true] %s484
          %490 = dma.hbm_to_vmem [thread:$0]  %s9, 4096, %s485, [#allocation16], 256, 256, 16
        $region48: #{tpu_custom_call.1} parent=11 // pred_fallthru
          _
        // Predicated region
        $region49: #{tpu_custom_call.1} parent=11 // pred_check
          %p491 = pneg %p269
        $region50: #{tpu_custom_call.1} parent=11 // pred_check_branch
          %493 = sbr.rel (%p491) target = $region52
        $region51: #{tpu_custom_call.1} parent=11 // pred_region
          _
        $region52: #{tpu_custom_call.1} parent=11 // pred_fallthru
          _
        // Predicated region
        $region53: #{tpu_custom_call.1} parent=11 // pred_check
          %p494 = pneg %p290
        $region54: #{tpu_custom_call.1} parent=11 // pred_check_branch
          %496 = sbr.rel (%p494) target = $region56
        $region55: #{tpu_custom_call.1} parent=11 // pred_region
          %s498 = ssub.s32 4096, 4096
          %499 = vsyncadd [#allocation19], %s498
          %s500 = sshll.u32 [#allocation18], 4
          %s501 = int_to_ptr.vmem [resolvable:$true] %s500
          %506 = dma.hbm_to_vmem [thread:$0]  %s11, 4096, %s501, [#allocation19], 64, 64, 4
        $region56: #{tpu_custom_call.1} parent=11 // pred_fallthru
          _
        // Predicated region
        $region57: #{tpu_custom_call.1} parent=11 // pred_check
          %p507 = pneg %p311
        $region58: #{tpu_custom_call.1} parent=11 // pred_check_branch
          %509 = sbr.rel (%p507) target = $region60
        $region59: #{tpu_custom_call.1} parent=11 // pred_region
          %s511 = ssub.s32 16, 16
          %512 = vsyncadd [#allocation19], %s511
          %s514 = sshll.u32 [#allocation20], 4
          %s515 = int_to_ptr.vmem [resolvable:$true] %s514
          %517 = dma.hbm_to_vmem [thread:$0]  %s12, 16, %s515, [#allocation19]
        $region60: #{tpu_custom_call.1} parent=11 // pred_fallthru
          _
        // Predicated region
        $region61: #{tpu_custom_call.1} parent=11 // pred_check
          %p518 = pneg %p332
        $region62: #{tpu_custom_call.1} parent=11 // pred_check_branch
          %520 = sbr.rel (%p518) target = $region64
        $region63: #{tpu_custom_call.1} parent=11 // pred_region
          _
        $region64: #{tpu_custom_call.1} parent=11 // pred_fallthru
          _
        // Predicated region
        $region65: #{tpu_custom_call.1} parent=11 // pred_check
          %p521 = pneg %p353
        $region66: #{tpu_custom_call.1} parent=11 // pred_check_branch
          %523 = sbr.rel (%p521) target = $region68
        $region67: #{tpu_custom_call.1} parent=11 // pred_region
          %s525 = ssub.s32 256, 256
          %526 = vsyncadd [#allocation22], %s525
          %s527 = sshll.u32 [#allocation21], 4
          %s528 = int_to_ptr.vmem [resolvable:$true] %s527
          %533 = dma.hbm_to_vmem [thread:$0]  %s14, 256, %s528, [#allocation22], 128, 128, 8
        $region68: #{tpu_custom_call.1} parent=11 // pred_fallthru
          _
      $region12: #{tpu_custom_call.1} parent=5 // pred_fallthru
        _
      %p534 = scmp.lt.s32.totalorder %s33, 2
      // Predicated region
      $region69: #{tpu_custom_call.1} parent=5 // pred_check
        %p535 = pneg %p534
      $region70: #{tpu_custom_call.1} parent=5 // pred_check_branch
        %537 = sbr.rel (%p535) target = $region72
      $region71: #{tpu_custom_call.1} parent=5 // pred_region
        // Predicated region
        $region73: #{tpu_custom_call.1} parent=71 // pred_check
          %p538 = pneg %p53
        $region74: #{tpu_custom_call.1} parent=71 // pred_check_branch
          %540 = sbr.rel (%p538) target = $region76
        $region75: #{tpu_custom_call.1} parent=71 // pred_region
          %s541 = sand.u32 %s43, 1
          %s542 = scalar_lea.sflag [#allocation4], %s541
          %s543 = sand.u32 %s43, 1
          %s544 = smul.addr %s543, 16
          %s545 = scalar_lea.vmem [#allocation3], %s544
          %s547 = ssub.s32 256, 256
          %548 = vsyncadd %s542, %s547
          %s549 = smul.addr %s33, 2
          %s550 = smul.addr %s549, 128
          %s551 = scalar_lea.hbm %s0, %s550
          %s552 = sshll.u32 %s545, 4
          %s553 = int_to_ptr.vmem [resolvable:$true] %s552
          %558 = dma.hbm_to_vmem [thread:$0]  %s551, 256, %s553, %s542, 128, 128, 8
        $region76: #{tpu_custom_call.1} parent=71 // pred_fallthru
          _
      $region72: #{tpu_custom_call.1} parent=5 // pred_fallthru
        _
      %p559 = scmp.le.s32.totalorder 1, %s33
      %p560 = scmp.lt.s32.totalorder %s33, 3
      %p561 = pnand %p559, %p560
      %p562 = pneg %p561
      // Predicated region
      $region77: #{tpu_custom_call.1} parent=5 // pred_check
        _
      $region78: #{tpu_custom_call.1} parent=5 // pred_check_branch
        %564 = sbr.rel (%p561) target = $region80
      $region79: #{tpu_custom_call.1} parent=5 // pred_region
        %s565 = ssub.s32 %s33, 1
        %s566 = sand.u32 %s46, 1
        %s567 = scalar_lea.sflag [#allocation4], %s566
        %s568 = sand.u32 %s46, 1
        %s569 = smul.addr %s568, 16
        %s570 = scalar_lea.vmem [#allocation3], %s569
        // Predicated region
        $region81: #{tpu_custom_call.1} parent=79 // pred_check
          %p571 = pneg %p59
        $region82: #{tpu_custom_call.1} parent=79 // pred_check_branch
          %573 = sbr.rel (%p571) target = $region84
        $region83: #{tpu_custom_call.1} parent=79 // pred_region
          %574 = dma.done %s567, 256
        $region84: #{tpu_custom_call.1} parent=79 // pred_fallthru
          _
        // Predicated region
        $region85: #{tpu_custom_call.1} parent=79 // pred_check
          %p575 = pneg %p80
        $region86: #{tpu_custom_call.1} parent=79 // pred_check_branch
          %577 = sbr.rel (%p575) target = $region88
        $region87: #{tpu_custom_call.1} parent=79 // pred_region
          %578 = dma.done [#allocation7], 16
        $region88: #{tpu_custom_call.1} parent=79 // pred_fallthru
          _
        // Predicated region
        $region89: #{tpu_custom_call.1} parent=79 // pred_check
          %p579 = pneg %p101
        $region90: #{tpu_custom_call.1} parent=79 // pred_check_branch
          %581 = sbr.rel (%p579) target = $region92
        $region91: #{tpu_custom_call.1} parent=79 // pred_region
          %582 = dma.done [#allocation7], 16
        $region92: #{tpu_custom_call.1} parent=79 // pred_fallthru
          _
        // Predicated region
        $region93: #{tpu_custom_call.1} parent=79 // pred_check
          %p583 = pneg %p122
        $region94: #{tpu_custom_call.1} parent=79 // pred_check_branch
          %585 = sbr.rel (%p583) target = $region96
        $region95: #{tpu_custom_call.1} parent=79 // pred_region
          %586 = dma.done [#allocation10], 3072
        $region96: #{tpu_custom_call.1} parent=79 // pred_fallthru
          _
        // Predicated region
        $region97: #{tpu_custom_call.1} parent=79 // pred_check
          %p587 = pneg %p164
        $region98: #{tpu_custom_call.1} parent=79 // pred_check_branch
          %589 = sbr.rel (%p587) target = $region100
        $region99: #{tpu_custom_call.1} parent=79 // pred_region
          %590 = dma.done [#allocation10], 1024
        $region100: #{tpu_custom_call.1} parent=79 // pred_fallthru
          _
        // Predicated region
        $region101: #{tpu_custom_call.1} parent=79 // pred_check
          %p591 = pneg %p185
        $region102: #{tpu_custom_call.1} parent=79 // pred_check_branch
          %593 = sbr.rel (%p591) target = $region104
        $region103: #{tpu_custom_call.1} parent=79 // pred_region
          %594 = dma.done [#allocation13], 16
        $region104: #{tpu_custom_call.1} parent=79 // pred_fallthru
          _
        // Predicated region
        $region105: #{tpu_custom_call.1} parent=79 // pred_check
          %p595 = pneg %p206
        $region106: #{tpu_custom_call.1} parent=79 // pred_check_branch
          %597 = sbr.rel (%p595) target = $region108
        $region107: #{tpu_custom_call.1} parent=79 // pred_region
          %598 = dma.done [#allocation13], 16
        $region108: #{tpu_custom_call.1} parent=79 // pred_fallthru
          _
        // Predicated region
        $region109: #{tpu_custom_call.1} parent=79 // pred_check
          %p599 = pneg %p227
        $region110: #{tpu_custom_call.1} parent=79 // pred_check_branch
          %601 = sbr.rel (%p599) target = $region112
        $region111: #{tpu_custom_call.1} parent=79 // pred_region
          %602 = dma.done [#allocation16], 16
        $region112: #{tpu_custom_call.1} parent=79 // pred_fallthru
          _
        // Predicated region
        $region113: #{tpu_custom_call.1} parent=79 // pred_check
          %p603 = pneg %p248
        $region114: #{tpu_custom_call.1} parent=79 // pred_check_branch
          %605 = sbr.rel (%p603) target = $region116
        $region115: #{tpu_custom_call.1} parent=79 // pred_region
          %606 = dma.done [#allocation16], 4096
        $region116: #{tpu_custom_call.1} parent=79 // pred_fallthru
          _
        // Predicated region
        $region117: #{tpu_custom_call.1} parent=79 // pred_check
          %p607 = pneg %p290
        $region118: #{tpu_custom_call.1} parent=79 // pred_check_branch
          %609 = sbr.rel (%p607) target = $region120
        $region119: #{tpu_custom_call.1} parent=79 // pred_region
          %610 = dma.done [#allocation19], 4096
        $region120: #{tpu_custom_call.1} parent=79 // pred_fallthru
          _
        // Predicated region
        $region121: #{tpu_custom_call.1} parent=79 // pred_check
          %p611 = pneg %p311
        $region122: #{tpu_custom_call.1} parent=79 // pred_check_branch
          %613 = sbr.rel (%p611) target = $region124
        $region123: #{tpu_custom_call.1} parent=79 // pred_region
          %614 = dma.done [#allocation19], 16
        $region124: #{tpu_custom_call.1} parent=79 // pred_fallthru
          _
        // Predicated region
        $region125: #{tpu_custom_call.1} parent=79 // pred_check
          %p615 = pneg %p353
        $region126: #{tpu_custom_call.1} parent=79 // pred_check_branch
          %617 = sbr.rel (%p615) target = $region128
        $region127: #{tpu_custom_call.1} parent=79 // pred_region
          %618 = dma.done [#allocation22], 256
        $region128: #{tpu_custom_call.1} parent=79 // pred_fallthru
          _
        %s619 = sand.u32 %s46, 1
        %s620 = scalar_lea.sflag [#allocation4], %s619
        %s621 = sand.u32 %s46, 1
        %s622 = smul.addr %s621, 16
        %s623 = scalar_lea.vmem [#allocation3], %s622
        %p624 = pneg %p59
        %p625 = pneg %p56
        %p626 = pneg %p80
        %p627 = pneg %p77
        %p628 = pneg %p101
        %p629 = pneg %p98
        %p630 = pneg %p122
        %p631 = pneg %p119
        %p632 = pneg %p143
        %p633 = pneg %p140
        %p634 = pneg %p164
        %p635 = pneg %p161
        %p636 = pneg %p185
        %p637 = pneg %p182
        %p638 = pneg %p206
        %p639 = pneg %p203
        %p640 = pneg %p227
        %p641 = pneg %p224
        %p642 = pneg %p248
        %p643 = pneg %p245
        %p644 = pneg %p269
        %p645 = pneg %p266
        %p646 = pneg %p290
        %p647 = pneg %p287
        %p648 = pneg %p311
        %p649 = pneg %p308
        %p650 = pneg %p332
        %p651 = pneg %p329
        %p652 = pneg %p353
        %p653 = pneg %p350
        %p654 = pneg %p379
        %p655 = pneg %p376
        %s656 = sand.u32 %s366, 1
        %s657 = scalar_lea.sflag [#allocation5], %s656
        %s658 = sand.u32 %s366, 1
        %s659 = smul.addr %s658, 16
        %s660 = scalar_lea.vmem [#allocation23], %s659
        %v662 = vld [vmem:[%s570] sm:$0xff]
        %v663 = vld [vmem:[%s570 + $0x8] sm:$0xff]
        %v664 = vld [vmem:[%s13] sm:$0xff]
        %v665 = vld [vmem:[%s13 + $0x8] sm:$0xff]
        %v666 = vld [vmem:[#allocation21] sm:$0xff]
        %v667 = vld [vmem:[#allocation21 + $0x8] sm:$0xff]
        %v668 = vlaneseq
        %v669 = vshrl.u32 %v668, 7
        %v670 = vadd.s32 %v669, 8
        %v671 = vlaneseq
        %v672 = vand.u32 %v671, 127
        %vm673 = vcmp.ge.s32.totalorder %v669, %v672
        %vm674 = vcmp.ge.s32.totalorder %v670, %v672
        %v675 = vsel %vm673, 1, 0
        %v676 = vsel %vm674, 1, 0
        %v677 = vcvt.s32.f32 %v675
        %v678 = vcvt.s32.f32 %v676
        %v679 = vld [vmem:[#allocation6] sm:$0x1]
        %v680 = vld [vmem:[#allocation8] sm:$0x1]
        %681 = vadd.xlane.f32.xlu0 %v662
        %v682 = vpop.xlane.xlu0 %681
        %683 = vadd.xlane.f32.xlu0 %v663
        %v684 = vpop.xlane.xlu0 %683
        %v685 = vrcp.pop 128.0
        %v686 = vmul.f32 %v682, %v685
        %v687 = vmul.f32 %v684, %v685
        %v688 = vsub.f32 %v662, %v686
        %v689 = vsub.f32 %v663, %v687
        %v690 = vmul.f32 %v688, %v688
        %v691 = vmul.f32 %v689, %v689
        %692 = vadd.xlane.f32.xlu0 %v690
        %v693 = vpop.xlane.xlu0 %692
        %694 = vadd.xlane.f32.xlu0 %v691
        %v695 = vpop.xlane.xlu0 %694
        %v696 = vmul.f32 %v693, %v685
        %v697 = vmul.f32 %v695, %v685
        %v698 = vadd.f32 %v696, 1e-05
        %v699 = vadd.f32 %v697, 1e-05
        %v700 = vrsqrt.pop %v698
        %v701 = vrsqrt.pop %v699
        %v702 = vmul.f32 %v688, %v700
        %v703 = vmul.f32 %v689, %v701
        %v705 = vlaneseq
        %v706 = vshrl.u32 %v705, 7
        %v707 = vsub.s32 0, %v706
        %v708 = vrot.slane %v679, %v707
        %v710 = vmul.f32 %v702, %v708
        %v711 = vmul.f32 %v703, %v708
        %v713 = vlaneseq
        %v714 = vshrl.u32 %v713, 7
        %v715 = vsub.s32 0, %v714
        %v716 = vrot.slane %v680, %v715
        %v718 = vadd.f32 %v710, %v716
        %v719 = vadd.f32 %v711, %v716
        %v720 = vpack.c.bf16 %v719, %v718
        %v721 = vld [vmem:[#allocation9] sm:$0xff]
        %v722 = vld [vmem:[#allocation9 + $0x8] sm:$0xf]
        %v723 = vld [vmem:[#allocation9 + $0xc] sm:$0xff]
        %v724 = vld [vmem:[#allocation9 + $0x14] sm:$0xf]
        %v725 = vld [vmem:[#allocation9 + $0x18] sm:$0xff]
        %v726 = vld [vmem:[#allocation9 + $0x20] sm:$0xf]
        %v727 = vld [vmem:[#allocation9 + $0x24] sm:$0xff]
        %v728 = vld [vmem:[#allocation9 + $0x2c] sm:$0xf]
        %v729 = vld [vmem:[#allocation9 + $0x30] sm:$0xff]
        %v730 = vld [vmem:[#allocation9 + $0x38] sm:$0xf]
        %v731 = vld [vmem:[#allocation9 + $0x3c] sm:$0xff]
        %v732 = vld [vmem:[#allocation9 + $0x44] sm:$0xf]
        %v733 = vld [vmem:[#allocation9 + $0x48] sm:$0xff]
        %v734 = vld [vmem:[#allocation9 + $0x50] sm:$0xf]
        %v735 = vld [vmem:[#allocation9 + $0x54] sm:$0xff]
        %v736 = vld [vmem:[#allocation9 + $0x5c] sm:$0xf]
        %v737 = vld [vmem:[#allocation9 + $0x60] sm:$0xff]
        %v738 = vld [vmem:[#allocation9 + $0x68] sm:$0xf]
        %v739 = vld [vmem:[#allocation9 + $0x6c] sm:$0xff]
        %v740 = vld [vmem:[#allocation9 + $0x74] sm:$0xf]
        %v741 = vld [vmem:[#allocation9 + $0x78] sm:$0xff]
        %v742 = vld [vmem:[#allocation9 + $0x80] sm:$0xf]
        %v743 = vld [vmem:[#allocation9 + $0x84] sm:$0xff]
        %v744 = vld [vmem:[#allocation9 + $0x8c] sm:$0xf]
        %v745 = vld [vmem:[#allocation9 + $0x90] sm:$0xff]
        %v746 = vld [vmem:[#allocation9 + $0x98] sm:$0xf]
        %v747 = vld [vmem:[#allocation9 + $0x9c] sm:$0xff]
        %v748 = vld [vmem:[#allocation9 + $0xa4] sm:$0xf]
        %v749 = vld [vmem:[#allocation9 + $0xa8] sm:$0xff]
        %v750 = vld [vmem:[#allocation9 + $0xb0] sm:$0xf]
        %v751 = vld [vmem:[#allocation9 + $0xb4] sm:$0xff]
        %v752 = vld [vmem:[#allocation9 + $0xbc] sm:$0xf]
        %v753 = vld [vmem:[%s4] sm:$0x7]
        %v755 = vlaneseq
        %v756 = vshrl.u32 %v755, 7
        %v757 = vsub.s32 0, %v756
        %v758 = vrot.slane %v753, %v757
        %v759 = vlaneseq
        %v760 = vshrl.u32 %v759, 7
        %v761 = vsub.s32 1, %v760
        %v762 = vrot.slane %v753, %v761
        %v763 = vlaneseq
        %v764 = vshrl.u32 %v763, 7
        %v765 = vsub.s32 2, %v764
        %v766 = vrot.slane %v753, %v765
        %v802 = vunpack.c.l.b16 %v721
        %v803 = vunpack.c.h.b16 %v721
        %v804 = vunpack.c.l.b16 %v722
        %v805 = vunpack.c.l.b16 %v723
        %v806 = vunpack.c.h.b16 %v723
        %v807 = vunpack.c.l.b16 %v724
        %v808 = vunpack.c.l.b16 %v725
        %v809 = vunpack.c.h.b16 %v725
        %v810 = vunpack.c.l.b16 %v726
        %v811 = vunpack.c.l.b16 %v727
        %v812 = vunpack.c.h.b16 %v727
        %v813 = vunpack.c.l.b16 %v728
        %v814 = vunpack.c.l.b16 %v729
        %v815 = vunpack.c.h.b16 %v729
        %v816 = vunpack.c.l.b16 %v730
        %v817 = vunpack.c.l.b16 %v731
        %v818 = vunpack.c.h.b16 %v731
        %v819 = vunpack.c.l.b16 %v732
        %v820 = vunpack.c.l.b16 %v733
        %v821 = vunpack.c.h.b16 %v733
        %v822 = vunpack.c.l.b16 %v734
        %v823 = vunpack.c.l.b16 %v735
        %v824 = vunpack.c.h.b16 %v735
        %v825 = vunpack.c.l.b16 %v736
        %v826 = vunpack.c.l.b16 %v737
        %v827 = vunpack.c.h.b16 %v737
        %v828 = vunpack.c.l.b16 %v738
        %v829 = vunpack.c.l.b16 %v739
        %v830 = vunpack.c.h.b16 %v739
        %v831 = vunpack.c.l.b16 %v740
        %v832 = vunpack.c.l.b16 %v741
        %v833 = vunpack.c.h.b16 %v741
        %v834 = vunpack.c.l.b16 %v742
        %v835 = vunpack.c.l.b16 %v743
        %v836 = vunpack.c.h.b16 %v743
        %v837 = vunpack.c.l.b16 %v744
        %v838 = vunpack.c.l.b16 %v745
        %v839 = vunpack.c.h.b16 %v745
        %v840 = vunpack.c.l.b16 %v746
        %v841 = vunpack.c.l.b16 %v747
        %v842 = vunpack.c.h.b16 %v747
        %v843 = vunpack.c.l.b16 %v748
        %v844 = vunpack.c.l.b16 %v749
        %v845 = vunpack.c.h.b16 %v749
        %v846 = vunpack.c.l.b16 %v750
        %v847 = vunpack.c.l.b16 %v751
        %v848 = vunpack.c.h.b16 %v751
        %v849 = vunpack.c.l.b16 %v752
        %v850 = vpack.c.b16 %v805, %v802
        %v851 = vpack.c.b16 %v806, %v803
        %v852 = vpack.c.b16 %v807, %v804
        %v853 = vpack.c.b16 %v811, %v808
        %v854 = vpack.c.b16 %v812, %v809
        %v855 = vpack.c.b16 %v813, %v810
        %v856 = vpack.c.b16 %v817, %v814
        %v857 = vpack.c.b16 %v818, %v815
        %v858 = vpack.c.b16 %v819, %v816
        %v859 = vpack.c.b16 %v823, %v820
        %v860 = vpack.c.b16 %v824, %v821
        %v861 = vpack.c.b16 %v825, %v822
        %v862 = vpack.c.b16 %v829, %v826
        %v863 = vpack.c.b16 %v830, %v827
        %v864 = vpack.c.b16 %v831, %v828
        %v865 = vpack.c.b16 %v835, %v832
        %v866 = vpack.c.b16 %v836, %v833
        %v867 = vpack.c.b16 %v837, %v834
        %v868 = vpack.c.b16 %v841, %v838
        %v869 = vpack.c.b16 %v842, %v839
        %v870 = vpack.c.b16 %v843, %v840
        %v871 = vpack.c.b16 %v847, %v844
        %v872 = vpack.c.b16 %v848, %v845
        %v873 = vpack.c.b16 %v849, %v846
        %898 = vmatprep.subr.bf16.mxu0 %v872
        %899 = vmatpush1.bf16.msra.mxu0 %v871
        %900 = vmatprep.subr.bf16.mxu0 %v869
        %901 = vmatpush1.bf16.msra.mxu0 %v868
        %902 = vmatprep.subr.bf16.mxu0 %v866
        %903 = vmatpush1.bf16.msra.mxu0 %v865
        %904 = vmatprep.subr.bf16.mxu0 %v863
        %905 = vmatpush1.bf16.msra.mxu0 %v862
        %906 = vmatprep.subr.bf16.mxu0 %v860
        %907 = vmatpush1.bf16.msra.mxu0 %v859
        %908 = vmatprep.subr.bf16.mxu0 %v857
        %909 = vmatpush1.bf16.msra.mxu0 %v856
        %910 = vmatprep.subr.bf16.mxu0 %v854
        %911 = vmatpush1.bf16.msra.mxu0 %v853
        %912 = vmatprep.subr.bf16.mxu0 %v851
        %913 = vmatpush1.bf16.msra.mxu0 %v850
        %914 = vmatprep.subr.bf16.mxu0 0
        %915 = vmatpush2.bf16.msra.mxu0 0
        %916 = vmatprep.subr.bf16.mxu0 0
        %917 = vmatpush2.bf16.msra.mxu0 0
        %918 = vmatprep.subr.bf16.mxu0 0
        %919 = vmatpush2.bf16.msra.mxu0 0
        %920 = vmatprep.subr.bf16.mxu0 0
        %921 = vmatpush2.bf16.msra.mxu0 0
        %922 = vmatprep.subr.bf16.mxu0 0
        %923 = vmatpush2.bf16.msra.mxu0 0
        %924 = vmatprep.subr.bf16.mxu0 0
        %925 = vmatpush2.bf16.msra.mxu0 0
        %926 = vmatprep.subr.bf16.mxu0 0
        %927 = vmatpush2.bf16.msra.mxu0 0
        %928 = vmatprep.subr.bf16.mxu0 0
        %929 = vmatpush2.bf16.msra.mxu0 0
        %930 = vmatprep.mubr.bf16.mxu0 0
        %931 = vmatmul.mubr.bf16.gmra.mxu0 %v720
        %v932 = vpop.f32.mrf.mxu0
        %v933 = vadd.f32 %v758, %v932
        %v934 = vpop.f32.mrf.mxu0
        %v935 = vadd.f32 %v762, %v934
        %v936 = vpop.f32.mrf.mxu0
        %v937 = vadd.f32 %v758, %v936
        %v938 = vpop.f32.mrf.mxu0
        %v939 = vadd.f32 %v762, %v938
        %940 = vdwg.mxu0
        %941 = vmatprep.subr.bf16.mxu0 0
        %942 = vmatpush1.bf16.msra.mxu0 %v873
        %943 = vmatprep.subr.bf16.mxu0 0
        %944 = vmatpush1.bf16.msra.mxu0 %v870
        %945 = vmatprep.subr.bf16.mxu0 0
        %946 = vmatpush1.bf16.msra.mxu0 %v867
        %947 = vmatprep.subr.bf16.mxu0 0
        %948 = vmatpush1.bf16.msra.mxu0 %v864
        %949 = vmatprep.subr.bf16.mxu0 0
        %950 = vmatpush1.bf16.msra.mxu0 %v861
        %951 = vmatprep.subr.bf16.mxu0 0
        %952 = vmatpush1.bf16.msra.mxu0 %v858
        %953 = vmatprep.subr.bf16.mxu0 0
        %954 = vmatpush1.bf16.msra.mxu0 %v855
        %955 = vmatprep.subr.bf16.mxu0 0
        %956 = vmatpush1.bf16.msra.mxu0 %v852
        %957 = vmatprep.subr.bf16.mxu0 0
        %958 = vmatpush2.bf16.msra.mxu0 0
        %959 = vmatprep.subr.bf16.mxu0 0
        %960 = vmatpush2.bf16.msra.mxu0 0
        %961 = vmatprep.subr.bf16.mxu0 0
        %962 = vmatpush2.bf16.msra.mxu0 0
        %963 = vmatprep.subr.bf16.mxu0 0
        %964 = vmatpush2.bf16.msra.mxu0 0
        %965 = vmatprep.subr.bf16.mxu0 0
        %966 = vmatpush2.bf16.msra.mxu0 0
        %967 = vmatprep.subr.bf16.mxu0 0
        %968 = vmatpush2.bf16.msra.mxu0 0
        %969 = vmatprep.subr.bf16.mxu0 0
        %970 = vmatpush2.bf16.msra.mxu0 0
        %971 = vmatprep.subr.bf16.mxu0 0
        %972 = vmatpush2.bf16.msra.mxu0 0
        %973 = vmatprep.mubr.bf16.mxu0 0
        %974 = vmatmul.mubr.bf16.gmra.mxu0 %v720
        %v975 = vpop.f32.mrf.mxu0
        %v976 = vadd.f32 %v766, %v975
        %v977 = vpop.f32.mrf.mxu0
        %v978 = vpop.f32.mrf.mxu0
        %v979 = vadd.f32 %v766, %v978
        %v980 = vpop.f32.mrf.mxu0
        %981 = vdwg.mxu0
        %v982 = vmul.f32 %v933, %v664
        %v983 = vmul.f32 %v937, %v665
        %984 = vrot.lane.b32.xlu0 %v933, 64
        %v985 = vpop.permute.xlu0 %984
        %986 = vrot.lane.b32.xlu0 %v937, 64
        %v987 = vpop.permute.xlu0 %986
        %v988 = vmul.f32 %v985, %v666
        %v989 = vmul.f32 %v987, %v667
        %v990 = vadd.f32 %v982, %v988
        %v991 = vadd.f32 %v983, %v989
        %v992 = vmul.f32 %v935, %v664
        %v993 = vmul.f32 %v939, %v665
        %994 = vrot.lane.b32.xlu0 %v935, 64
        %v995 = vpop.permute.xlu0 %994
        %996 = vrot.lane.b32.xlu0 %v939, 64
        %v997 = vpop.permute.xlu0 %996
        %v998 = vmul.f32 %v995, %v666
        %v999 = vmul.f32 %v997, %v667
        %v1000 = vadd.f32 %v992, %v998
        %v1001 = vadd.f32 %v993, %v999
        %v1002 = vpack.c.bf16 %v991, %v990
        %v1003 = vpack.c.bf16 %v1001, %v1000
        %v1004 = vpack.c.bf16 %v979, %v976
        %1006 = vrot.lane.b32.xlu0 %v1002, 64
        %v1007 = vpop.permute.xlu0 %1006
        %1009 = vrot.lane.b32.xlu0 %v1003, 64
        %v1010 = vpop.permute.xlu0 %1009
        %vm1011 = vcmask 130048
        %v1013 = vsel %vm1011, %v1007, 0
        %v1016 = vsel %vm1011, %v1010, 0
        %1018 = vmatprep.subr.bf16.mxu0 0
        %1019 = vmatpush1.bf16.xpose.msra.mxu0 0
        %1020 = vmatprep.subr.bf16.mxu0 0
        %1021 = vmatpush1.bf16.xpose.msra.mxu0 0
        %1022 = vmatprep.subr.bf16.mxu0 0
        %1023 = vmatpush1.bf16.xpose.msra.mxu0 0
        %1024 = vmatprep.subr.bf16.mxu0 0
        %1025 = vmatpush1.bf16.xpose.msra.mxu0 0
        %1026 = vmatprep.subr.bf16.mxu0 0
        %1027 = vmatpush1.bf16.xpose.msra.mxu0 0
        %1028 = vmatprep.subr.bf16.mxu0 0
        %1029 = vmatpush1.bf16.xpose.msra.mxu0 0
        %1030 = vmatprep.subr.bf16.mxu0 0
        %1031 = vmatpush1.bf16.xpose.msra.mxu0 0
        %1032 = vmatprep.subr.bf16.mxu0 0
        %1033 = vmatpush1.bf16.xpose.msra.mxu0 %v1016
        %1034 = vmatprep.subr.bf16.mxu0 0
        %1035 = vmatpush2.bf16.xpose.msra.mxu0 0
        %1036 = vmatprep.subr.bf16.mxu0 0
        %1037 = vmatpush2.bf16.xpose.msra.mxu0 0
        %1038 = vmatprep.subr.bf16.mxu0 0
        %1039 = vmatpush2.bf16.xpose.msra.mxu0 0
        %1040 = vmatprep.subr.bf16.mxu0 0
        %1041 = vmatpush2.bf16.xpose.msra.mxu0 0
        %1042 = vmatprep.subr.bf16.mxu0 0
        %1043 = vmatpush2.bf16.xpose.msra.mxu0 0
        %1044 = vmatprep.subr.bf16.mxu0 0
        %1045 = vmatpush2.bf16.xpose.msra.mxu0 0
        %1046 = vmatprep.subr.bf16.mxu0 0
        %1047 = vmatpush2.bf16.xpose.msra.mxu0 0
        %1048 = vmatprep.subr.bf16.mxu0 0
        %1049 = vmatpush2.bf16.xpose.msra.mxu0 0
        %1050 = vmatprep.mubr.bf16.mxu0 0
        %1051 = vmatmul.mubr.bf16.gmra.mxu0 %v1013
        %v1052 = vpop.f32.mrf.mxu0
        %v1053 = vadd.f32 0.0, %v1052
        %v1054 = vpop.f32.mrf.mxu0
        %v1055 = vpop.f32.mrf.mxu0
        %v1056 = vadd.f32 0.0, %v1055
        %v1057 = vpop.f32.mrf.mxu0
        %1058 = vdwg.mxu0
        %v1060 = vsel %vm1011, %v1002, 0
        %v1063 = vsel %vm1011, %v1003, 0
        %1065 = vmatprep.subr.bf16.mxu0 0
        %1066 = vmatpush1.bf16.xpose.msra.mxu0 0
        %1067 = vmatprep.subr.bf16.mxu0 0
        %1068 = vmatpush1.bf16.xpose.msra.mxu0 0
        %1069 = vmatprep.subr.bf16.mxu0 0
        %1070 = vmatpush1.bf16.xpose.msra.mxu0 0
        %1071 = vmatprep.subr.bf16.mxu0 0
        %1072 = vmatpush1.bf16.xpose.msra.mxu0 0
        %1073 = vmatprep.subr.bf16.mxu0 0
        %1074 = vmatpush1.bf16.xpose.msra.mxu0 0
        %1075 = vmatprep.subr.bf16.mxu0 0
        %1076 = vmatpush1.bf16.xpose.msra.mxu0 0
        %1077 = vmatprep.subr.bf16.mxu0 0
        %1078 = vmatpush1.bf16.xpose.msra.mxu0 0
        %1079 = vmatprep.subr.bf16.mxu0 0
        %1080 = vmatpush1.bf16.xpose.msra.mxu0 %v1063
        %1081 = vmatprep.subr.bf16.mxu0 0
        %1082 = vmatpush2.bf16.xpose.msra.mxu0 0
        %1083 = vmatprep.subr.bf16.mxu0 0
        %1084 = vmatpush2.bf16.xpose.msra.mxu0 0
        %1085 = vmatprep.subr.bf16.mxu0 0
        %1086 = vmatpush2.bf16.xpose.msra.mxu0 0
        %1087 = vmatprep.subr.bf16.mxu0 0
        %1088 = vmatpush2.bf16.xpose.msra.mxu0 0
        %1089 = vmatprep.subr.bf16.mxu0 0
        %1090 = vmatpush2.bf16.xpose.msra.mxu0 0
        %1091 = vmatprep.subr.bf16.mxu0 0
        %1092 = vmatpush2.bf16.xpose.msra.mxu0 0
        %1093 = vmatprep.subr.bf16.mxu0 0
        %1094 = vmatpush2.bf16.xpose.msra.mxu0 0
        %1095 = vmatprep.subr.bf16.mxu0 0
        %1096 = vmatpush2.bf16.xpose.msra.mxu0 0
        %1097 = vmatprep.mubr.bf16.mxu0 0
        %1098 = vmatmul.mubr.bf16.gmra.mxu0 %v1060
        %v1099 = vpop.f32.mrf.mxu0
        %v1100 = vadd.f32 %v1053, %v1099
        %v1101 = vpop.f32.mrf.mxu0
        %v1102 = vpop.f32.mrf.mxu0
        %v1103 = vadd.f32 %v1056, %v1102
        %v1104 = vpop.f32.mrf.mxu0
        %1105 = vdwg.mxu0
        %v1106 = vadd.f32 %v1100, %v677
        %v1107 = vadd.f32 %v1103, %v678
        %v1108 = vsel %vm1011, %v1106, -inf
        %1109 = vmax.xlane.f32.xlu0 %v1108
        %v1110 = vpop.xlane.xlu0 %1109
        %v1111 = vsel %vm1011, %v1107, -inf
        %1112 = vmax.xlane.f32.xlu0 %v1111
        %v1113 = vpop.xlane.xlu0 %1112
        %v1114 = vsub.f32 %v1106, %v1110
        %v1115 = vsub.f32 %v1107, %v1113
        %v1116 = vmul.f32 %v1114, 1.442695
        %v1117 = vpow.pop %v1116
        %v1118 = vmul.f32 %v1115, 1.442695
        %v1119 = vpow.pop %v1118
        %v1120 = vsel %vm1011, %v1117, 0.0
        %1121 = vadd.xlane.f32.xlu0 %v1120
        %v1122 = vpop.xlane.xlu0 %1121
        %v1123 = vsel %vm1011, %v1119, 0.0
        %1124 = vadd.xlane.f32.xlu0 %v1123
        %v1125 = vpop.xlane.xlu0 %1124
        %v1126 = vrcp.pop %v1122
        %v1127 = vrcp.pop %v1125
        %v1128 = vmul.f32 %v1117, %v1126
        %v1129 = vmul.f32 %v1119, %v1127
        %v1130 = vpack.c.bf16 %v1129, %v1128
        %v1132 = vsel %vm1011, %v1130, 0
        %1134 = vmatprep.subr.bf16.mxu0 0
        %1135 = vmatpush1.bf16.msra.mxu0 0
        %1136 = vmatprep.subr.bf16.mxu0 0
        %1137 = vmatpush1.bf16.msra.mxu0 0
        %1138 = vmatprep.subr.bf16.mxu0 0
        %1139 = vmatpush1.bf16.msra.mxu0 0
        %1140 = vmatprep.subr.bf16.mxu0 0
        %1141 = vmatpush1.bf16.msra.mxu0 0
        %1142 = vmatprep.subr.bf16.mxu0 0
        %1143 = vmatpush1.bf16.msra.mxu0 0
        %1144 = vmatprep.subr.bf16.mxu0 0
        %1145 = vmatpush1.bf16.msra.mxu0 0
        %1146 = vmatprep.subr.bf16.mxu0 0
        %1147 = vmatpush1.bf16.msra.mxu0 0
        %1148 = vmatprep.subr.bf16.mxu0 0
        %1149 = vmatpush1.bf16.msra.mxu0 %v1004
        %1150 = vmatprep.subr.bf16.mxu0 0
        %1151 = vmatpush2.bf16.msra.mxu0 0
        %1152 = vmatprep.subr.bf16.mxu0 0
        %1153 = vmatpush2.bf16.msra.mxu0 0
        %1154 = vmatprep.subr.bf16.mxu0 0
        %1155 = vmatpush2.bf16.msra.mxu0 0
        %1156 = vmatprep.subr.bf16.mxu0 0
        %1157 = vmatpush2.bf16.msra.mxu0 0
        %1158 = vmatprep.subr.bf16.mxu0 0
        %1159 = vmatpush2.bf16.msra.mxu0 0
        %1160 = vmatprep.subr.bf16.mxu0 0
        %1161 = vmatpush2.bf16.msra.mxu0 0
        %1162 = vmatprep.subr.bf16.mxu0 0
        %1163 = vmatpush2.bf16.msra.mxu0 0
        %1164 = vmatprep.subr.bf16.mxu0 0
        %1165 = vmatpush2.bf16.msra.mxu0 0
        %1166 = vmatprep.mubr.bf16.mxu0 0
        %1167 = vmatmul.mubr.bf16.gmra.mxu0 %v1132
        %v1168 = vpop.f32.mrf.mxu0
        %v1169 = vadd.f32 0.0, %v1168
        %v1170 = vpop.f32.mrf.mxu0
        %v1171 = vpop.f32.mrf.mxu0
        %v1172 = vadd.f32 0.0, %v1171
        %v1173 = vpop.f32.mrf.mxu0
        %1174 = vdwg.mxu0
        %vm1175 = vcmask 261120
        %1176 = vst.msk [vmem:[#allocation2] sm:$0xff] %vm1175, %v1169
        %1177 = vst.msk [vmem:[#allocation2 + $0x8] sm:$0xff] %vm1175, %v1172
        %1178 = vrot.lane.b32.xlu0 %v1002, 48
        %v1179 = vpop.permute.xlu0 %1178
        %1180 = vrot.lane.b32.xlu0 %v1003, 48
        %v1181 = vpop.permute.xlu0 %1180
        %v1183 = vsel %vm1011, %v1179, 0
        %v1186 = vsel %vm1011, %v1181, 0
        %1188 = vmatprep.subr.bf16.mxu0 0
        %1189 = vmatpush1.bf16.xpose.msra.mxu0 0
        %1190 = vmatprep.subr.bf16.mxu0 0
        %1191 = vmatpush1.bf16.xpose.msra.mxu0 0
        %1192 = vmatprep.subr.bf16.mxu0 0
        %1193 = vmatpush1.bf16.xpose.msra.mxu0 0
        %1194 = vmatprep.subr.bf16.mxu0 0
        %1195 = vmatpush1.bf16.xpose.msra.mxu0 0
        %1196 = vmatprep.subr.bf16.mxu0 0
        %1197 = vmatpush1.bf16.xpose.msra.mxu0 0
        %1198 = vmatprep.subr.bf16.mxu0 0
        %1199 = vmatpush1.bf16.xpose.msra.mxu0 0
        %1200 = vmatprep.subr.bf16.mxu0 0
        %1201 = vmatpush1.bf16.xpose.msra.mxu0 0
        %1202 = vmatprep.subr.bf16.mxu0 0
        %1203 = vmatpush1.bf16.xpose.msra.mxu0 %v1186
        %1204 = vmatprep.subr.bf16.mxu0 0
        %1205 = vmatpush2.bf16.xpose.msra.mxu0 0
        %1206 = vmatprep.subr.bf16.mxu0 0
        %1207 = vmatpush2.bf16.xpose.msra.mxu0 0
        %1208 = vmatprep.subr.bf16.mxu0 0
        %1209 = vmatpush2.bf16.xpose.msra.mxu0 0
        %1210 = vmatprep.subr.bf16.mxu0 0
        %1211 = vmatpush2.bf16.xpose.msra.mxu0 0
        %1212 = vmatprep.subr.bf16.mxu0 0
        %1213 = vmatpush2.bf16.xpose.msra.mxu0 0
        %1214 = vmatprep.subr.bf16.mxu0 0
        %1215 = vmatpush2.bf16.xpose.msra.mxu0 0
        %1216 = vmatprep.subr.bf16.mxu0 0
        %1217 = vmatpush2.bf16.xpose.msra.mxu0 0
        %1218 = vmatprep.subr.bf16.mxu0 0
        %1219 = vmatpush2.bf16.xpose.msra.mxu0 0
        %1220 = vmatprep.mubr.bf16.mxu0 0
        %1221 = vmatmul.mubr.bf16.gmra.mxu0 %v1183
        %v1222 = vpop.f32.mrf.mxu0
        %v1223 = vadd.f32 0.0, %v1222
        %v1224 = vpop.f32.mrf.mxu0
        %v1225 = vpop.f32.mrf.mxu0
        %v1226 = vadd.f32 0.0, %v1225
        %v1227 = vpop.f32.mrf.mxu0
        %1228 = vdwg.mxu0
        %1229 = vrot.lane.b32.xlu0 %v1002, 112
        %v1230 = vpop.permute.xlu0 %1229
        %1231 = vrot.lane.b32.xlu0 %v1003, 112
        %v1232 = vpop.permute.xlu0 %1231
        %v1234 = vsel %vm1011, %v1230, 0
        %v1237 = vsel %vm1011, %v1232, 0
        %1239 = vmatprep.subr.bf16.mxu0 0
        %1240 = vmatpush1.bf16.xpose.msra.mxu0 0
        %1241 = vmatprep.subr.bf16.mxu0 0
        %1242 = vmatpush1.bf16.xpose.msra.mxu0 0
        %1243 = vmatprep.subr.bf16.mxu0 0
        %1244 = vmatpush1.bf16.xpose.msra.mxu0 0
        %1245 = vmatprep.subr.bf16.mxu0 0
        %1246 = vmatpush1.bf16.xpose.msra.mxu0 0
        %1247 = vmatprep.subr.bf16.mxu0 0
        %1248 = vmatpush1.bf16.xpose.msra.mxu0 0
        %1249 = vmatprep.subr.bf16.mxu0 0
        %1250 = vmatpush1.bf16.xpose.msra.mxu0 0
        %1251 = vmatprep.subr.bf16.mxu0 0
        %1252 = vmatpush1.bf16.xpose.msra.mxu0 0
        %1253 = vmatprep.subr.bf16.mxu0 0
        %1254 = vmatpush1.bf16.xpose.msra.mxu0 %v1237
        %1255 = vmatprep.subr.bf16.mxu0 0
        %1256 = vmatpush2.bf16.xpose.msra.mxu0 0
        %1257 = vmatprep.subr.bf16.mxu0 0
        %1258 = vmatpush2.bf16.xpose.msra.mxu0 0
        %1259 = vmatprep.subr.bf16.mxu0 0
        %1260 = vmatpush2.bf16.xpose.msra.mxu0 0
        %1261 = vmatprep.subr.bf16.mxu0 0
        %1262 = vmatpush2.bf16.xpose.msra.mxu0 0
        %1263 = vmatprep.subr.bf16.mxu0 0
        %1264 = vmatpush2.bf16.xpose.msra.mxu0 0
        %1265 = vmatprep.subr.bf16.mxu0 0
        %1266 = vmatpush2.bf16.xpose.msra.mxu0 0
        %1267 = vmatprep.subr.bf16.mxu0 0
        %1268 = vmatpush2.bf16.xpose.msra.mxu0 0
        %1269 = vmatprep.subr.bf16.mxu0 0
        %1270 = vmatpush2.bf16.xpose.msra.mxu0 0
        %1271 = vmatprep.mubr.bf16.mxu0 0
        %1272 = vmatmul.mubr.bf16.gmra.mxu0 %v1234
        %v1273 = vpop.f32.mrf.mxu0
        %v1274 = vadd.f32 %v1223, %v1273
        %v1275 = vpop.f32.mrf.mxu0
        %v1276 = vpop.f32.mrf.mxu0
        %v1277 = vadd.f32 %v1226, %v1276
        %v1278 = vpop.f32.mrf.mxu0
        %1279 = vdwg.mxu0
        %v1280 = vadd.f32 %v1274, %v677
        %v1281 = vadd.f32 %v1277, %v678
        %v1282 = vsel %vm1011, %v1280, -inf
        %1283 = vmax.xlane.f32.xlu0 %v1282
        %v1284 = vpop.xlane.xlu0 %1283
        %v1285 = vsel %vm1011, %v1281, -inf
        %1286 = vmax.xlane.f32.xlu0 %v1285
        %v1287 = vpop.xlane.xlu0 %1286
        %v1288 = vsub.f32 %v1280, %v1284
        %v1289 = vsub.f32 %v1281, %v1287
        %v1290 = vmul.f32 %v1288, 1.442695
        %v1291 = vpow.pop %v1290
        %v1292 = vmul.f32 %v1289, 1.442695
        %v1293 = vpow.pop %v1292
        %v1294 = vsel %vm1011, %v1291, 0.0
        %1295 = vadd.xlane.f32.xlu0 %v1294
        %v1296 = vpop.xlane.xlu0 %1295
        %v1297 = vsel %vm1011, %v1293, 0.0
        %1298 = vadd.xlane.f32.xlu0 %v1297
        %v1299 = vpop.xlane.xlu0 %1298
        %v1300 = vrcp.pop %v1296
        %v1301 = vrcp.pop %v1299
        %v1302 = vmul.f32 %v1291, %v1300
        %v1303 = vmul.f32 %v1293, %v1301
        %v1304 = vpack.c.bf16 %v1303, %v1302
        %1306 = vrot.lane.b32.xlu0 %v1004, 96
        %v1307 = vpop.permute.xlu0 %1306
        %v1310 = vsel %vm1011, %v1304, 0
        %1312 = vmatprep.subr.bf16.mxu0 0
        %1313 = vmatpush1.bf16.msra.mxu0 0
        %1314 = vmatprep.subr.bf16.mxu0 0
        %1315 = vmatpush1.bf16.msra.mxu0 0
        %1316 = vmatprep.subr.bf16.mxu0 0
        %1317 = vmatpush1.bf16.msra.mxu0 0
        %1318 = vmatprep.subr.bf16.mxu0 0
        %1319 = vmatpush1.bf16.msra.mxu0 0
        %1320 = vmatprep.subr.bf16.mxu0 0
        %1321 = vmatpush1.bf16.msra.mxu0 0
        %1322 = vmatprep.subr.bf16.mxu0 0
        %1323 = vmatpush1.bf16.msra.mxu0 0
        %1324 = vmatprep.subr.bf16.mxu0 0
        %1325 = vmatpush1.bf16.msra.mxu0 0
        %1326 = vmatprep.subr.bf16.mxu0 0
        %1327 = vmatpush1.bf16.msra.mxu0 %v1307
        %1328 = vmatprep.subr.bf16.mxu0 0
        %1329 = vmatpush2.bf16.msra.mxu0 0
        %1330 = vmatprep.subr.bf16.mxu0 0
        %1331 = vmatpush2.bf16.msra.mxu0 0
        %1332 = vmatprep.subr.bf16.mxu0 0
        %1333 = vmatpush2.bf16.msra.mxu0 0
        %1334 = vmatprep.subr.bf16.mxu0 0
        %1335 = vmatpush2.bf16.msra.mxu0 0
        %1336 = vmatprep.subr.bf16.mxu0 0
        %1337 = vmatpush2.bf16.msra.mxu0 0
        %1338 = vmatprep.subr.bf16.mxu0 0
        %1339 = vmatpush2.bf16.msra.mxu0 0
        %1340 = vmatprep.subr.bf16.mxu0 0
        %1341 = vmatpush2.bf16.msra.mxu0 0
        %1342 = vmatprep.subr.bf16.mxu0 0
        %1343 = vmatpush2.bf16.msra.mxu0 0
        %1344 = vmatprep.mubr.bf16.mxu0 0
        %1345 = vmatmul.mubr.bf16.gmra.mxu0 %v1310
        %v1346 = vpop.f32.mrf.mxu0
        %v1347 = vadd.f32 0.0, %v1346
        %v1348 = vpop.f32.mrf.mxu0
        %v1349 = vpop.f32.mrf.mxu0
        %v1350 = vadd.f32 0.0, %v1349
        %v1351 = vpop.f32.mrf.mxu0
        %1352 = vdwg.mxu0
        %1355 = vrot.lane.b32.xlu0 %v1347, 32
        %v1356 = vpop.permute.xlu0 %1355
        %1357 = vrot.lane.b32.xlu0 %v1350, 32
        %v1358 = vpop.permute.xlu0 %1357
        %vm1361 = vcmask 523520
        %1362 = vst.msk [vmem:[#allocation2] sm:$0xff] %vm1361, %v1356
        %1363 = vst.msk [vmem:[#allocation2 + $0x8] sm:$0xff] %vm1361, %v1358
        %1364 = vrot.lane.b32.xlu0 %v1002, 32
        %v1365 = vpop.permute.xlu0 %1364
        %1366 = vrot.lane.b32.xlu0 %v1003, 32
        %v1367 = vpop.permute.xlu0 %1366
        %v1369 = vsel %vm1011, %v1365, 0
        %v1372 = vsel %vm1011, %v1367, 0
        %1374 = vmatprep.subr.bf16.mxu0 0
        %1375 = vmatpush1.bf16.xpose.msra.mxu0 0
        %1376 = vmatprep.subr.bf16.mxu0 0
        %1377 = vmatpush1.bf16.xpose.msra.mxu0 0
        %1378 = vmatprep.subr.bf16.mxu0 0
        %1379 = vmatpush1.bf16.xpose.msra.mxu0 0
        %1380 = vmatprep.subr.bf16.mxu0 0
        %1381 = vmatpush1.bf16.xpose.msra.mxu0 0
        %1382 = vmatprep.subr.bf16.mxu0 0
        %1383 = vmatpush1.bf16.xpose.msra.mxu0 0
        %1384 = vmatprep.subr.bf16.mxu0 0
        %1385 = vmatpush1.bf16.xpose.msra.mxu0 0
        %1386 = vmatprep.subr.bf16.mxu0 0
        %1387 = vmatpush1.bf16.xpose.msra.mxu0 0
        %1388 = vmatprep.subr.bf16.mxu0 0
        %1389 = vmatpush1.bf16.xpose.msra.mxu0 %v1372
        %1390 = vmatprep.subr.bf16.mxu0 0
        %1391 = vmatpush2.bf16.xpose.msra.mxu0 0
        %1392 = vmatprep.subr.bf16.mxu0 0
        %1393 = vmatpush2.bf16.xpose.msra.mxu0 0
        %1394 = vmatprep.subr.bf16.mxu0 0
        %1395 = vmatpush2.bf16.xpose.msra.mxu0 0
        %1396 = vmatprep.subr.bf16.mxu0 0
        %1397 = vmatpush2.bf16.xpose.msra.mxu0 0
        %1398 = vmatprep.subr.bf16.mxu0 0
        %1399 = vmatpush2.bf16.xpose.msra.mxu0 0
        %1400 = vmatprep.subr.bf16.mxu0 0
        %1401 = vmatpush2.bf16.xpose.msra.mxu0 0
        %1402 = vmatprep.subr.bf16.mxu0 0
        %1403 = vmatpush2.bf16.xpose.msra.mxu0 0
        %1404 = vmatprep.subr.bf16.mxu0 0
        %1405 = vmatpush2.bf16.xpose.msra.mxu0 0
        %1406 = vmatprep.mubr.bf16.mxu0 0
        %1407 = vmatmul.mubr.bf16.gmra.mxu0 %v1369
        %v1408 = vpop.f32.mrf.mxu0
        %v1409 = vadd.f32 0.0, %v1408
        %v1410 = vpop.f32.mrf.mxu0
        %v1411 = vpop.f32.mrf.mxu0
        %v1412 = vadd.f32 0.0, %v1411
        %v1413 = vpop.f32.mrf.mxu0
        %1414 = vdwg.mxu0
        %1415 = vrot.lane.b32.xlu0 %v1002, 96
        %v1416 = vpop.permute.xlu0 %1415
        %1417 = vrot.lane.b32.xlu0 %v1003, 96
        %v1418 = vpop.permute.xlu0 %1417
        %v1420 = vsel %vm1011, %v1416, 0
        %v1423 = vsel %vm1011, %v1418, 0
        %1425 = vmatprep.subr.bf16.mxu0 0
        %1426 = vmatpush1.bf16.xpose.msra.mxu0 0
        %1427 = vmatprep.subr.bf16.mxu0 0
        %1428 = vmatpush1.bf16.xpose.msra.mxu0 0
        %1429 = vmatprep.subr.bf16.mxu0 0
        %1430 = vmatpush1.bf16.xpose.msra.mxu0 0
        %1431 = vmatprep.subr.bf16.mxu0 0
        %1432 = vmatpush1.bf16.xpose.msra.mxu0 0
        %1433 = vmatprep.subr.bf16.mxu0 0
        %1434 = vmatpush1.bf16.xpose.msra.mxu0 0
        %1435 = vmatprep.subr.bf16.mxu0 0
        %1436 = vmatpush1.bf16.xpose.msra.mxu0 0
        %1437 = vmatprep.subr.bf16.mxu0 0
        %1438 = vmatpush1.bf16.xpose.msra.mxu0 0
        %1439 = vmatprep.subr.bf16.mxu0 0
        %1440 = vmatpush1.bf16.xpose.msra.mxu0 %v1423
        %1441 = vmatprep.subr.bf16.mxu0 0
        %1442 = vmatpush2.bf16.xpose.msra.mxu0 0
        %1443 = vmatprep.subr.bf16.mxu0 0
        %1444 = vmatpush2.bf16.xpose.msra.mxu0 0
        %1445 = vmatprep.subr.bf16.mxu0 0
        %1446 = vmatpush2.bf16.xpose.msra.mxu0 0
        %1447 = vmatprep.subr.bf16.mxu0 0
        %1448 = vmatpush2.bf16.xpose.msra.mxu0 0
        %1449 = vmatprep.subr.bf16.mxu0 0
        %1450 = vmatpush2.bf16.xpose.msra.mxu0 0
        %1451 = vmatprep.subr.bf16.mxu0 0
        %1452 = vmatpush2.bf16.xpose.msra.mxu0 0
        %1453 = vmatprep.subr.bf16.mxu0 0
        %1454 = vmatpush2.bf16.xpose.msra.mxu0 0
        %1455 = vmatprep.subr.bf16.mxu0 0
        %1456 = vmatpush2.bf16.xpose.msra.mxu0 0
        %1457 = vmatprep.mubr.bf16.mxu0 0
        %1458 = vmatmul.mubr.bf16.gmra.mxu0 %v1420
        %v1459 = vpop.f32.mrf.mxu0
        %v1460 = vadd.f32 %v1409, %v1459
        %v1461 = vpop.f32.mrf.mxu0
        %v1462 = vpop.f32.mrf.mxu0
        %v1463 = vadd.f32 %v1412, %v1462
        %v1464 = vpop.f32.mrf.mxu0
        %1465 = vdwg.mxu0
        %v1466 = vadd.f32 %v1460, %v677
        %v1467 = vadd.f32 %v1463, %v678
        %v1468 = vsel %vm1011, %v1466, -inf
        %1469 = vmax.xlane.f32.xlu0 %v1468
        %v1470 = vpop.xlane.xlu0 %1469
        %v1471 = vsel %vm1011, %v1467, -inf
        %1472 = vmax.xlane.f32.xlu0 %v1471
        %v1473 = vpop.xlane.xlu0 %1472
        %v1474 = vsub.f32 %v1466, %v1470
        %v1475 = vsub.f32 %v1467, %v1473
        %v1476 = vmul.f32 %v1474, 1.442695
        %v1477 = vpow.pop %v1476
        %v1478 = vmul.f32 %v1475, 1.442695
        %v1479 = vpow.pop %v1478
        %v1480 = vsel %vm1011, %v1477, 0.0
        %1481 = vadd.xlane.f32.xlu0 %v1480
        %v1482 = vpop.xlane.xlu0 %1481
        %v1483 = vsel %vm1011, %v1479, 0.0
        %1484 = vadd.xlane.f32.xlu0 %v1483
        %v1485 = vpop.xlane.xlu0 %1484
        %v1486 = vrcp.pop %v1482
        %v1487 = vrcp.pop %v1485
        %v1488 = vmul.f32 %v1477, %v1486
        %v1489 = vmul.f32 %v1479, %v1487
        %v1490 = vpack.c.bf16 %v1489, %v1488
        %1491 = vrot.lane.b32.xlu0 %v1004, 64
        %v1492 = vpop.permute.xlu0 %1491
        %v1495 = vsel %vm1011, %v1490, 0
        %1497 = vmatprep.subr.bf16.mxu0 0
        %1498 = vmatpush1.bf16.msra.mxu0 0
        %1499 = vmatprep.subr.bf16.mxu0 0
        %1500 = vmatpush1.bf16.msra.mxu0 0
        %1501 = vmatprep.subr.bf16.mxu0 0
        %1502 = vmatpush1.bf16.msra.mxu0 0
        %1503 = vmatprep.subr.bf16.mxu0 0
        %1504 = vmatpush1.bf16.msra.mxu0 0
        %1505 = vmatprep.subr.bf16.mxu0 0
        %1506 = vmatpush1.bf16.msra.mxu0 0
        %1507 = vmatprep.subr.bf16.mxu0 0
        %1508 = vmatpush1.bf16.msra.mxu0 0
        %1509 = vmatprep.subr.bf16.mxu0 0
        %1510 = vmatpush1.bf16.msra.mxu0 0
        %1511 = vmatprep.subr.bf16.mxu0 0
        %1512 = vmatpush1.bf16.msra.mxu0 %v1492
        %1513 = vmatprep.subr.bf16.mxu0 0
        %1514 = vmatpush2.bf16.msra.mxu0 0
        %1515 = vmatprep.subr.bf16.mxu0 0
        %1516 = vmatpush2.bf16.msra.mxu0 0
        %1517 = vmatprep.subr.bf16.mxu0 0
        %1518 = vmatpush2.bf16.msra.mxu0 0
        %1519 = vmatprep.subr.bf16.mxu0 0
        %1520 = vmatpush2.bf16.msra.mxu0 0
        %1521 = vmatprep.subr.bf16.mxu0 0
        %1522 = vmatpush2.bf16.msra.mxu0 0
        %1523 = vmatprep.subr.bf16.mxu0 0
        %1524 = vmatpush2.bf16.msra.mxu0 0
        %1525 = vmatprep.subr.bf16.mxu0 0
        %1526 = vmatpush2.bf16.msra.mxu0 0
        %1527 = vmatprep.subr.bf16.mxu0 0
        %1528 = vmatpush2.bf16.msra.mxu0 0
        %1529 = vmatprep.mubr.bf16.mxu0 0
        %1530 = vmatmul.mubr.bf16.gmra.mxu0 %v1495
        %v1531 = vpop.f32.mrf.mxu0
        %v1532 = vadd.f32 0.0, %v1531
        %v1533 = vpop.f32.mrf.mxu0
        %v1534 = vpop.f32.mrf.mxu0
        %v1535 = vadd.f32 0.0, %v1534
        %v1536 = vpop.f32.mrf.mxu0
        %1537 = vdwg.mxu0
        %1540 = vrot.lane.b32.xlu0 %v1532, 64
        %v1541 = vpop.permute.xlu0 %1540
        %1542 = vrot.lane.b32.xlu0 %v1535, 64
        %v1543 = vpop.permute.xlu0 %1542
        %vm1546 = vcmask 785920
        %1547 = vst.msk [vmem:[#allocation2] sm:$0xff] %vm1546, %v1541
        %1548 = vst.msk [vmem:[#allocation2 + $0x8] sm:$0xff] %vm1546, %v1543
        %1549 = vrot.lane.b32.xlu0 %v1002, 16
        %v1550 = vpop.permute.xlu0 %1549
        %1551 = vrot.lane.b32.xlu0 %v1003, 16
        %v1552 = vpop.permute.xlu0 %1551
        %v1554 = vsel %vm1011, %v1550, 0
        %v1557 = vsel %vm1011, %v1552, 0
        %1559 = vmatprep.subr.bf16.mxu0 0
        %1560 = vmatpush1.bf16.xpose.msra.mxu0 0
        %1561 = vmatprep.subr.bf16.mxu0 0
        %1562 = vmatpush1.bf16.xpose.msra.mxu0 0
        %1563 = vmatprep.subr.bf16.mxu0 0
        %1564 = vmatpush1.bf16.xpose.msra.mxu0 0
        %1565 = vmatprep.subr.bf16.mxu0 0
        %1566 = vmatpush1.bf16.xpose.msra.mxu0 0
        %1567 = vmatprep.subr.bf16.mxu0 0
        %1568 = vmatpush1.bf16.xpose.msra.mxu0 0
        %1569 = vmatprep.subr.bf16.mxu0 0
        %1570 = vmatpush1.bf16.xpose.msra.mxu0 0
        %1571 = vmatprep.subr.bf16.mxu0 0
        %1572 = vmatpush1.bf16.xpose.msra.mxu0 0
        %1573 = vmatprep.subr.bf16.mxu0 0
        %1574 = vmatpush1.bf16.xpose.msra.mxu0 %v1557
        %1575 = vmatprep.subr.bf16.mxu0 0
        %1576 = vmatpush2.bf16.xpose.msra.mxu0 0
        %1577 = vmatprep.subr.bf16.mxu0 0
        %1578 = vmatpush2.bf16.xpose.msra.mxu0 0
        %1579 = vmatprep.subr.bf16.mxu0 0
        %1580 = vmatpush2.bf16.xpose.msra.mxu0 0
        %1581 = vmatprep.subr.bf16.mxu0 0
        %1582 = vmatpush2.bf16.xpose.msra.mxu0 0
        %1583 = vmatprep.subr.bf16.mxu0 0
        %1584 = vmatpush2.bf16.xpose.msra.mxu0 0
        %1585 = vmatprep.subr.bf16.mxu0 0
        %1586 = vmatpush2.bf16.xpose.msra.mxu0 0
        %1587 = vmatprep.subr.bf16.mxu0 0
        %1588 = vmatpush2.bf16.xpose.msra.mxu0 0
        %1589 = vmatprep.subr.bf16.mxu0 0
        %1590 = vmatpush2.bf16.xpose.msra.mxu0 0
        %1591 = vmatprep.mubr.bf16.mxu0 0
        %1592 = vmatmul.mubr.bf16.gmra.mxu0 %v1554
        %v1593 = vpop.f32.mrf.mxu0
        %v1594 = vadd.f32 0.0, %v1593
        %v1595 = vpop.f32.mrf.mxu0
        %v1596 = vpop.f32.mrf.mxu0
        %v1597 = vadd.f32 0.0, %v1596
        %v1598 = vpop.f32.mrf.mxu0
        %1599 = vdwg.mxu0
        %1600 = vrot.lane.b32.xlu0 %v1002, 80
        %v1601 = vpop.permute.xlu0 %1600
        %1602 = vrot.lane.b32.xlu0 %v1003, 80
        %v1603 = vpop.permute.xlu0 %1602
        %v1605 = vsel %vm1011, %v1601, 0
        %v1608 = vsel %vm1011, %v1603, 0
        %1610 = vmatprep.subr.bf16.mxu0 0
        %1611 = vmatpush1.bf16.xpose.msra.mxu0 0
        %1612 = vmatprep.subr.bf16.mxu0 0
        %1613 = vmatpush1.bf16.xpose.msra.mxu0 0
        %1614 = vmatprep.subr.bf16.mxu0 0
        %1615 = vmatpush1.bf16.xpose.msra.mxu0 0
        %1616 = vmatprep.subr.bf16.mxu0 0
        %1617 = vmatpush1.bf16.xpose.msra.mxu0 0
        %1618 = vmatprep.subr.bf16.mxu0 0
        %1619 = vmatpush1.bf16.xpose.msra.mxu0 0
        %1620 = vmatprep.subr.bf16.mxu0 0
        %1621 = vmatpush1.bf16.xpose.msra.mxu0 0
        %1622 = vmatprep.subr.bf16.mxu0 0
        %1623 = vmatpush1.bf16.xpose.msra.mxu0 0
        %1624 = vmatprep.subr.bf16.mxu0 0
        %1625 = vmatpush1.bf16.xpose.msra.mxu0 %v1608
        %1626 = vmatprep.subr.bf16.mxu0 0
        %1627 = vmatpush2.bf16.xpose.msra.mxu0 0
        %1628 = vmatprep.subr.bf16.mxu0 0
        %1629 = vmatpush2.bf16.xpose.msra.mxu0 0
        %1630 = vmatprep.subr.bf16.mxu0 0
        %1631 = vmatpush2.bf16.xpose.msra.mxu0 0
        %1632 = vmatprep.subr.bf16.mxu0 0
        %1633 = vmatpush2.bf16.xpose.msra.mxu0 0
        %1634 = vmatprep.subr.bf16.mxu0 0
        %1635 = vmatpush2.bf16.xpose.msra.mxu0 0
        %1636 = vmatprep.subr.bf16.mxu0 0
        %1637 = vmatpush2.bf16.xpose.msra.mxu0 0
        %1638 = vmatprep.subr.bf16.mxu0 0
        %1639 = vmatpush2.bf16.xpose.msra.mxu0 0
        %1640 = vmatprep.subr.bf16.mxu0 0
        %1641 = vmatpush2.bf16.xpose.msra.mxu0 0
        %1642 = vmatprep.mubr.bf16.mxu0 0
        %1643 = vmatmul.mubr.bf16.gmra.mxu0 %v1605
        %v1644 = vpop.f32.mrf.mxu0
        %v1645 = vadd.f32 %v1594, %v1644
        %v1646 = vpop.f32.mrf.mxu0
        %v1647 = vpop.f32.mrf.mxu0
        %v1648 = vadd.f32 %v1597, %v1647
        %v1649 = vpop.f32.mrf.mxu0
        %1650 = vdwg.mxu0
        %v1651 = vadd.f32 %v1645, %v677
        %v1652 = vadd.f32 %v1648, %v678
        %v1653 = vsel %vm1011, %v1651, -inf
        %1654 = vmax.xlane.f32.xlu0 %v1653
        %v1655 = vpop.xlane.xlu0 %1654
        %v1656 = vsel %vm1011, %v1652, -inf
        %1657 = vmax.xlane.f32.xlu0 %v1656
        %v1658 = vpop.xlane.xlu0 %1657
        %v1659 = vsub.f32 %v1651, %v1655
        %v1660 = vsub.f32 %v1652, %v1658
        %v1661 = vmul.f32 %v1659, 1.442695
        %v1662 = vpow.pop %v1661
        %v1663 = vmul.f32 %v1660, 1.442695
        %v1664 = vpow.pop %v1663
        %v1665 = vsel %vm1011, %v1662, 0.0
        %1666 = vadd.xlane.f32.xlu0 %v1665
        %v1667 = vpop.xlane.xlu0 %1666
        %v1668 = vsel %vm1011, %v1664, 0.0
        %1669 = vadd.xlane.f32.xlu0 %v1668
        %v1670 = vpop.xlane.xlu0 %1669
        %v1671 = vrcp.pop %v1667
        %v1672 = vrcp.pop %v1670
        %v1673 = vmul.f32 %v1662, %v1671
        %v1674 = vmul.f32 %v1664, %v1672
        %v1675 = vpack.c.bf16 %v1674, %v1673
        %1676 = vrot.lane.b32.xlu0 %v1004, 32
        %v1677 = vpop.permute.xlu0 %1676
        %v1680 = vsel %vm1011, %v1675, 0
        %1682 = vmatprep.subr.bf16.mxu0 0
        %1683 = vmatpush1.bf16.msra.mxu0 0
        %1684 = vmatprep.subr.bf16.mxu0 0
        %1685 = vmatpush1.bf16.msra.mxu0 0
        %1686 = vmatprep.subr.bf16.mxu0 0
        %1687 = vmatpush1.bf16.msra.mxu0 0
        %1688 = vmatprep.subr.bf16.mxu0 0
        %1689 = vmatpush1.bf16.msra.mxu0 0
        %1690 = vmatprep.subr.bf16.mxu0 0
        %1691 = vmatpush1.bf16.msra.mxu0 0
        %1692 = vmatprep.subr.bf16.mxu0 0
        %1693 = vmatpush1.bf16.msra.mxu0 0
        %1694 = vmatprep.subr.bf16.mxu0 0
        %1695 = vmatpush1.bf16.msra.mxu0 0
        %1696 = vmatprep.subr.bf16.mxu0 0
        %1697 = vmatpush1.bf16.msra.mxu0 %v1677
        %1698 = vmatprep.subr.bf16.mxu0 0
        %1699 = vmatpush2.bf16.msra.mxu0 0
        %1700 = vmatprep.subr.bf16.mxu0 0
        %1701 = vmatpush2.bf16.msra.mxu0 0
        %1702 = vmatprep.subr.bf16.mxu0 0
        %1703 = vmatpush2.bf16.msra.mxu0 0
        %1704 = vmatprep.subr.bf16.mxu0 0
        %1705 = vmatpush2.bf16.msra.mxu0 0
        %1706 = vmatprep.subr.bf16.mxu0 0
        %1707 = vmatpush2.bf16.msra.mxu0 0
        %1708 = vmatprep.subr.bf16.mxu0 0
        %1709 = vmatpush2.bf16.msra.mxu0 0
        %1710 = vmatprep.subr.bf16.mxu0 0
        %1711 = vmatpush2.bf16.msra.mxu0 0
        %1712 = vmatprep.subr.bf16.mxu0 0
        %1713 = vmatpush2.bf16.msra.mxu0 0
        %1714 = vmatprep.mubr.bf16.mxu0 0
        %1715 = vmatmul.mubr.bf16.gmra.mxu0 %v1680
        %v1716 = vpop.f32.mrf.mxu0
        %v1717 = vadd.f32 0.0, %v1716
        %v1718 = vpop.f32.mrf.mxu0
        %v1719 = vpop.f32.mrf.mxu0
        %v1720 = vadd.f32 0.0, %v1719
        %v1721 = vpop.f32.mrf.mxu0
        %1722 = vdwg.mxu0
        %1725 = vrot.lane.b32.xlu0 %v1717, 96
        %v1726 = vpop.permute.xlu0 %1725
        %1727 = vrot.lane.b32.xlu0 %v1720, 96
        %v1728 = vpop.permute.xlu0 %1727
        %vm1731 = vcmask 1048320
        %1732 = vst.msk [vmem:[#allocation2] sm:$0xff] %vm1731, %v1726
        %1733 = vst.msk [vmem:[#allocation2 + $0x8] sm:$0xff] %vm1731, %v1728
        %v1734 = vld [vmem:[#allocation2] sm:$0xff]
        %v1735 = vld [vmem:[#allocation2 + $0x8] sm:$0xff]
        %v1736 = vpack.c.bf16 %v1735, %v1734
        %v1737 = vld [vmem:[#allocation11] sm:$0xf]
        %v1738 = vld [vmem:[#allocation11 + $0x4] sm:$0xf]
        %v1739 = vld [vmem:[#allocation11 + $0x8] sm:$0xf]
        %v1740 = vld [vmem:[#allocation11 + $0xc] sm:$0xf]
        %v1741 = vld [vmem:[#allocation11 + $0x10] sm:$0xf]
        %v1742 = vld [vmem:[#allocation11 + $0x14] sm:$0xf]
        %v1743 = vld [vmem:[#allocation11 + $0x18] sm:$0xf]
        %v1744 = vld [vmem:[#allocation11 + $0x1c] sm:$0xf]
        %v1745 = vld [vmem:[#allocation11 + $0x20] sm:$0xf]
        %v1746 = vld [vmem:[#allocation11 + $0x24] sm:$0xf]
        %v1747 = vld [vmem:[#allocation11 + $0x28] sm:$0xf]
        %v1748 = vld [vmem:[#allocation11 + $0x2c] sm:$0xf]
        %v1749 = vld [vmem:[#allocation11 + $0x30] sm:$0xf]
        %v1750 = vld [vmem:[#allocation11 + $0x34] sm:$0xf]
        %v1751 = vld [vmem:[#allocation11 + $0x38] sm:$0xf]
        %v1752 = vld [vmem:[#allocation11 + $0x3c] sm:$0xf]
        %v1753 = vld [vmem:[#allocation12] sm:$0x1]
        %v1755 = vlaneseq
        %v1756 = vshrl.u32 %v1755, 7
        %v1757 = vsub.s32 0, %v1756
        %v1758 = vrot.slane %v1753, %v1757
        %v1776 = vunpack.c.l.b16 %v1737
        %v1777 = vunpack.c.l.b16 %v1738
        %v1778 = vunpack.c.l.b16 %v1739
        %v1779 = vunpack.c.l.b16 %v1740
        %v1780 = vunpack.c.l.b16 %v1741
        %v1781 = vunpack.c.l.b16 %v1742
        %v1782 = vunpack.c.l.b16 %v1743
        %v1783 = vunpack.c.l.b16 %v1744
        %v1784 = vunpack.c.l.b16 %v1745
        %v1785 = vunpack.c.l.b16 %v1746
        %v1786 = vunpack.c.l.b16 %v1747
        %v1787 = vunpack.c.l.b16 %v1748
        %v1788 = vunpack.c.l.b16 %v1749
        %v1789 = vunpack.c.l.b16 %v1750
        %v1790 = vunpack.c.l.b16 %v1751
        %v1791 = vunpack.c.l.b16 %v1752
        %v1792 = vpack.c.b16 %v1777, %v1776
        %v1793 = vpack.c.b16 %v1779, %v1778
        %v1794 = vpack.c.b16 %v1781, %v1780
        %v1795 = vpack.c.b16 %v1783, %v1782
        %v1796 = vpack.c.b16 %v1785, %v1784
        %v1797 = vpack.c.b16 %v1787, %v1786
        %v1798 = vpack.c.b16 %v1789, %v1788
        %v1799 = vpack.c.b16 %v1791, %v1790
        %1808 = vmatprep.subr.bf16.mxu0 0
        %1809 = vmatpush1.bf16.msra.mxu0 %v1799
        %1810 = vmatprep.subr.bf16.mxu0 0
        %1811 = vmatpush1.bf16.msra.mxu0 %v1798
        %1812 = vmatprep.subr.bf16.mxu0 0
        %1813 = vmatpush1.bf16.msra.mxu0 %v1797
        %1814 = vmatprep.subr.bf16.mxu0 0
        %1815 = vmatpush1.bf16.msra.mxu0 %v1796
        %1816 = vmatprep.subr.bf16.mxu0 0
        %1817 = vmatpush1.bf16.msra.mxu0 %v1795
        %1818 = vmatprep.subr.bf16.mxu0 0
        %1819 = vmatpush1.bf16.msra.mxu0 %v1794
        %1820 = vmatprep.subr.bf16.mxu0 0
        %1821 = vmatpush1.bf16.msra.mxu0 %v1793
        %1822 = vmatprep.subr.bf16.mxu0 0
        %1823 = vmatpush1.bf16.msra.mxu0 %v1792
        %1824 = vmatprep.subr.bf16.mxu0 0
        %1825 = vmatpush2.bf16.msra.mxu0 0
        %1826 = vmatprep.subr.bf16.mxu0 0
        %1827 = vmatpush2.bf16.msra.mxu0 0
        %1828 = vmatprep.subr.bf16.mxu0 0
        %1829 = vmatpush2.bf16.msra.mxu0 0
        %1830 = vmatprep.subr.bf16.mxu0 0
        %1831 = vmatpush2.bf16.msra.mxu0 0
        %1832 = vmatprep.subr.bf16.mxu0 0
        %1833 = vmatpush2.bf16.msra.mxu0 0
        %1834 = vmatprep.subr.bf16.mxu0 0
        %1835 = vmatpush2.bf16.msra.mxu0 0
        %1836 = vmatprep.subr.bf16.mxu0 0
        %1837 = vmatpush2.bf16.msra.mxu0 0
        %1838 = vmatprep.subr.bf16.mxu0 0
        %1839 = vmatpush2.bf16.msra.mxu0 0
        %1840 = vmatprep.mubr.bf16.mxu0 0
        %1841 = vmatmul.mubr.bf16.gmra.mxu0 %v1736
        %v1842 = vpop.f32.mrf.mxu0
        %v1843 = vadd.f32 %v1758, %v1842
        %v1844 = vpop.f32.mrf.mxu0
        %v1845 = vpop.f32.mrf.mxu0
        %v1846 = vadd.f32 %v1758, %v1845
        %v1847 = vpop.f32.mrf.mxu0
        %1848 = vdwg.mxu0
        %v1849 = vadd.f32 %v662, %v1843
        %v1850 = vadd.f32 %v663, %v1846
        %v1851 = vld [vmem:[#allocation14] sm:$0x1]
        %v1852 = vld [vmem:[#allocation15] sm:$0x1]
        %1853 = vadd.xlane.f32.xlu0 %v1849
        %v1854 = vpop.xlane.xlu0 %1853
        %1855 = vadd.xlane.f32.xlu0 %v1850
        %v1856 = vpop.xlane.xlu0 %1855
        %v1857 = vmul.f32 %v1854, %v685
        %v1858 = vmul.f32 %v1856, %v685
        %v1859 = vsub.f32 %v1849, %v1857
        %v1860 = vsub.f32 %v1850, %v1858
        %v1861 = vmul.f32 %v1859, %v1859
        %v1862 = vmul.f32 %v1860, %v1860
        %1863 = vadd.xlane.f32.xlu0 %v1861
        %v1864 = vpop.xlane.xlu0 %1863
        %1865 = vadd.xlane.f32.xlu0 %v1862
        %v1866 = vpop.xlane.xlu0 %1865
        %v1867 = vmul.f32 %v1864, %v685
        %v1868 = vmul.f32 %v1866, %v685
        %v1869 = vadd.f32 %v1867, 1e-05
        %v1870 = vadd.f32 %v1868, 1e-05
        %v1871 = vrsqrt.pop %v1869
        %v1872 = vrsqrt.pop %v1870
        %v1873 = vmul.f32 %v1859, %v1871
        %v1874 = vmul.f32 %v1860, %v1872
        %v1876 = vlaneseq
        %v1877 = vshrl.u32 %v1876, 7
        %v1878 = vsub.s32 0, %v1877
        %v1879 = vrot.slane %v1851, %v1878
        %v1881 = vmul.f32 %v1873, %v1879
        %v1882 = vmul.f32 %v1874, %v1879
        %v1884 = vlaneseq
        %v1885 = vshrl.u32 %v1884, 7
        %v1886 = vsub.s32 0, %v1885
        %v1887 = vrot.slane %v1852, %v1886
        %v1889 = vadd.f32 %v1881, %v1887
        %v1890 = vadd.f32 %v1882, %v1887
        %v1891 = vpack.c.bf16 %v1890, %v1889
        %v1892 = vld [vmem:[#allocation17] sm:$0xff]
        %v1893 = vld [vmem:[#allocation17 + $0x8] sm:$0xff]
        %v1894 = vld [vmem:[#allocation17 + $0x10] sm:$0xff]
        %v1895 = vld [vmem:[#allocation17 + $0x18] sm:$0xff]
        %v1896 = vld [vmem:[#allocation17 + $0x20] sm:$0xff]
        %v1897 = vld [vmem:[#allocation17 + $0x28] sm:$0xff]
        %v1898 = vld [vmem:[#allocation17 + $0x30] sm:$0xff]
        %v1899 = vld [vmem:[#allocation17 + $0x38] sm:$0xff]
        %v1900 = vld [vmem:[#allocation17 + $0x40] sm:$0xff]
        %v1901 = vld [vmem:[#allocation17 + $0x48] sm:$0xff]
        %v1902 = vld [vmem:[#allocation17 + $0x50] sm:$0xff]
        %v1903 = vld [vmem:[#allocation17 + $0x58] sm:$0xff]
        %v1904 = vld [vmem:[#allocation17 + $0x60] sm:$0xff]
        %v1905 = vld [vmem:[#allocation17 + $0x68] sm:$0xff]
        %v1906 = vld [vmem:[#allocation17 + $0x70] sm:$0xff]
        %v1907 = vld [vmem:[#allocation17 + $0x78] sm:$0xff]
        %v1908 = vld [vmem:[#allocation17 + $0x80] sm:$0xff]
        %v1909 = vld [vmem:[#allocation17 + $0x88] sm:$0xff]
        %v1910 = vld [vmem:[#allocation17 + $0x90] sm:$0xff]
        %v1911 = vld [vmem:[#allocation17 + $0x98] sm:$0xff]
        %v1912 = vld [vmem:[#allocation17 + $0xa0] sm:$0xff]
        %v1913 = vld [vmem:[#allocation17 + $0xa8] sm:$0xff]
        %v1914 = vld [vmem:[#allocation17 + $0xb0] sm:$0xff]
        %v1915 = vld [vmem:[#allocation17 + $0xb8] sm:$0xff]
        %v1916 = vld [vmem:[#allocation17 + $0xc0] sm:$0xff]
        %v1917 = vld [vmem:[#allocation17 + $0xc8] sm:$0xff]
        %v1918 = vld [vmem:[#allocation17 + $0xd0] sm:$0xff]
        %v1919 = vld [vmem:[#allocation17 + $0xd8] sm:$0xff]
        %v1920 = vld [vmem:[#allocation17 + $0xe0] sm:$0xff]
        %v1921 = vld [vmem:[#allocation17 + $0xe8] sm:$0xff]
        %v1922 = vld [vmem:[#allocation17 + $0xf0] sm:$0xff]
        %v1923 = vld [vmem:[#allocation17 + $0xf8] sm:$0xff]
        %v1924 = vld [vmem:[%s10] sm:$0xf]
        %v1926 = vlaneseq
        %v1927 = vshrl.u32 %v1926, 7
        %v1928 = vsub.s32 0, %v1927
        %v1929 = vrot.slane %v1924, %v1928
        %v1930 = vlaneseq
        %v1931 = vshrl.u32 %v1930, 7
        %v1932 = vsub.s32 1, %v1931
        %v1933 = vrot.slane %v1924, %v1932
        %v1934 = vlaneseq
        %v1935 = vshrl.u32 %v1934, 7
        %v1936 = vsub.s32 2, %v1935
        %v1937 = vrot.slane %v1924, %v1936
        %v1938 = vlaneseq
        %v1939 = vshrl.u32 %v1938, 7
        %v1940 = vsub.s32 3, %v1939
        %v1941 = vrot.slane %v1924, %v1940
        %v1978 = vunpack.c.l.b16 %v1892
        %v1979 = vunpack.c.h.b16 %v1892
        %v1980 = vunpack.c.l.b16 %v1893
        %v1981 = vunpack.c.h.b16 %v1893
        %v1982 = vunpack.c.l.b16 %v1894
        %v1983 = vunpack.c.h.b16 %v1894
        %v1984 = vunpack.c.l.b16 %v1895
        %v1985 = vunpack.c.h.b16 %v1895
        %v1986 = vunpack.c.l.b16 %v1896
        %v1987 = vunpack.c.h.b16 %v1896
        %v1988 = vunpack.c.l.b16 %v1897
        %v1989 = vunpack.c.h.b16 %v1897
        %v1990 = vunpack.c.l.b16 %v1898
        %v1991 = vunpack.c.h.b16 %v1898
        %v1992 = vunpack.c.l.b16 %v1899
        %v1993 = vunpack.c.h.b16 %v1899
        %v1994 = vunpack.c.l.b16 %v1900
        %v1995 = vunpack.c.h.b16 %v1900
        %v1996 = vunpack.c.l.b16 %v1901
        %v1997 = vunpack.c.h.b16 %v1901
        %v1998 = vunpack.c.l.b16 %v1902
        %v1999 = vunpack.c.h.b16 %v1902
        %v2000 = vunpack.c.l.b16 %v1903
        %v2001 = vunpack.c.h.b16 %v1903
        %v2002 = vunpack.c.l.b16 %v1904
        %v2003 = vunpack.c.h.b16 %v1904
        %v2004 = vunpack.c.l.b16 %v1905
        %v2005 = vunpack.c.h.b16 %v1905
        %v2006 = vunpack.c.l.b16 %v1906
        %v2007 = vunpack.c.h.b16 %v1906
        %v2008 = vunpack.c.l.b16 %v1907
        %v2009 = vunpack.c.h.b16 %v1907
        %v2010 = vunpack.c.l.b16 %v1908
        %v2011 = vunpack.c.h.b16 %v1908
        %v2012 = vunpack.c.l.b16 %v1909
        %v2013 = vunpack.c.h.b16 %v1909
        %v2014 = vunpack.c.l.b16 %v1910
        %v2015 = vunpack.c.h.b16 %v1910
        %v2016 = vunpack.c.l.b16 %v1911
        %v2017 = vunpack.c.h.b16 %v1911
        %v2018 = vunpack.c.l.b16 %v1912
        %v2019 = vunpack.c.h.b16 %v1912
        %v2020 = vunpack.c.l.b16 %v1913
        %v2021 = vunpack.c.h.b16 %v1913
        %v2022 = vunpack.c.l.b16 %v1914
        %v2023 = vunpack.c.h.b16 %v1914
        %v2024 = vunpack.c.l.b16 %v1915
        %v2025 = vunpack.c.h.b16 %v1915
        %v2026 = vunpack.c.l.b16 %v1916
        %v2027 = vunpack.c.h.b16 %v1916
        %v2028 = vunpack.c.l.b16 %v1917
        %v2029 = vunpack.c.h.b16 %v1917
        %v2030 = vunpack.c.l.b16 %v1918
        %v2031 = vunpack.c.h.b16 %v1918
        %v2032 = vunpack.c.l.b16 %v1919
        %v2033 = vunpack.c.h.b16 %v1919
        %v2034 = vunpack.c.l.b16 %v1920
        %v2035 = vunpack.c.h.b16 %v1920
        %v2036 = vunpack.c.l.b16 %v1921
        %v2037 = vunpack.c.h.b16 %v1921
        %v2038 = vunpack.c.l.b16 %v1922
        %v2039 = vunpack.c.h.b16 %v1922
        %v2040 = vunpack.c.l.b16 %v1923
        %v2041 = vunpack.c.h.b16 %v1923
        %v2042 = vpack.c.b16 %v1982, %v1978
        %v2043 = vpack.c.b16 %v1983, %v1979
        %v2044 = vpack.c.b16 %v1984, %v1980
        %v2045 = vpack.c.b16 %v1985, %v1981
        %v2046 = vpack.c.b16 %v1990, %v1986
        %v2047 = vpack.c.b16 %v1991, %v1987
        %v2048 = vpack.c.b16 %v1992, %v1988
        %v2049 = vpack.c.b16 %v1993, %v1989
        %v2050 = vpack.c.b16 %v1998, %v1994
        %v2051 = vpack.c.b16 %v1999, %v1995
        %v2052 = vpack.c.b16 %v2000, %v1996
        %v2053 = vpack.c.b16 %v2001, %v1997
        %v2054 = vpack.c.b16 %v2006, %v2002
        %v2055 = vpack.c.b16 %v2007, %v2003
        %v2056 = vpack.c.b16 %v2008, %v2004
        %v2057 = vpack.c.b16 %v2009, %v2005
        %v2058 = vpack.c.b16 %v2014, %v2010
        %v2059 = vpack.c.b16 %v2015, %v2011
        %v2060 = vpack.c.b16 %v2016, %v2012
        %v2061 = vpack.c.b16 %v2017, %v2013
        %v2062 = vpack.c.b16 %v2022, %v2018
        %v2063 = vpack.c.b16 %v2023, %v2019
        %v2064 = vpack.c.b16 %v2024, %v2020
        %v2065 = vpack.c.b16 %v2025, %v2021
        %v2066 = vpack.c.b16 %v2030, %v2026
        %v2067 = vpack.c.b16 %v2031, %v2027
        %v2068 = vpack.c.b16 %v2032, %v2028
        %v2069 = vpack.c.b16 %v2033, %v2029
        %v2070 = vpack.c.b16 %v2038, %v2034
        %v2071 = vpack.c.b16 %v2039, %v2035
        %v2072 = vpack.c.b16 %v2040, %v2036
        %v2073 = vpack.c.b16 %v2041, %v2037
        %2106 = vmatprep.subr.bf16.mxu0 %v2071
        %2107 = vmatpush1.bf16.msra.mxu0 %v2070
        %2108 = vmatprep.subr.bf16.mxu0 %v2067
        %2109 = vmatpush1.bf16.msra.mxu0 %v2066
        %2110 = vmatprep.subr.bf16.mxu0 %v2063
        %2111 = vmatpush1.bf16.msra.mxu0 %v2062
        %2112 = vmatprep.subr.bf16.mxu0 %v2059
        %2113 = vmatpush1.bf16.msra.mxu0 %v2058
        %2114 = vmatprep.subr.bf16.mxu0 %v2055
        %2115 = vmatpush1.bf16.msra.mxu0 %v2054
        %2116 = vmatprep.subr.bf16.mxu0 %v2051
        %2117 = vmatpush1.bf16.msra.mxu0 %v2050
        %2118 = vmatprep.subr.bf16.mxu0 %v2047
        %2119 = vmatpush1.bf16.msra.mxu0 %v2046
        %2120 = vmatprep.subr.bf16.mxu0 %v2043
        %2121 = vmatpush1.bf16.msra.mxu0 %v2042
        %2122 = vmatprep.subr.bf16.mxu0 0
        %2123 = vmatpush2.bf16.msra.mxu0 0
        %2124 = vmatprep.subr.bf16.mxu0 0
        %2125 = vmatpush2.bf16.msra.mxu0 0
        %2126 = vmatprep.subr.bf16.mxu0 0
        %2127 = vmatpush2.bf16.msra.mxu0 0
        %2128 = vmatprep.subr.bf16.mxu0 0
        %2129 = vmatpush2.bf16.msra.mxu0 0
        %2130 = vmatprep.subr.bf16.mxu0 0
        %2131 = vmatpush2.bf16.msra.mxu0 0
        %2132 = vmatprep.subr.bf16.mxu0 0
        %2133 = vmatpush2.bf16.msra.mxu0 0
        %2134 = vmatprep.subr.bf16.mxu0 0
        %2135 = vmatpush2.bf16.msra.mxu0 0
        %2136 = vmatprep.subr.bf16.mxu0 0
        %2137 = vmatpush2.bf16.msra.mxu0 0
        %2138 = vmatprep.mubr.bf16.mxu0 0
        %2139 = vmatmul.mubr.bf16.gmra.mxu0 %v1891
        %v2140 = vpop.f32.mrf.mxu0
        %v2141 = vadd.f32 %v1929, %v2140
        %v2142 = vpop.f32.mrf.mxu0
        %v2143 = vadd.f32 %v1933, %v2142
        %v2144 = vpop.f32.mrf.mxu0
        %v2145 = vadd.f32 %v1929, %v2144
        %v2146 = vpop.f32.mrf.mxu0
        %v2147 = vadd.f32 %v1933, %v2146
        %2148 = vdwg.mxu0
        %2149 = vmatprep.subr.bf16.mxu0 %v2073
        %2150 = vmatpush1.bf16.msra.mxu0 %v2072
        %2151 = vmatprep.subr.bf16.mxu0 %v2069
        %2152 = vmatpush1.bf16.msra.mxu0 %v2068
        %2153 = vmatprep.subr.bf16.mxu0 %v2065
        %2154 = vmatpush1.bf16.msra.mxu0 %v2064
        %2155 = vmatprep.subr.bf16.mxu0 %v2061
        %2156 = vmatpush1.bf16.msra.mxu0 %v2060
        %2157 = vmatprep.subr.bf16.mxu0 %v2057
        %2158 = vmatpush1.bf16.msra.mxu0 %v2056
        %2159 = vmatprep.subr.bf16.mxu0 %v2053
        %2160 = vmatpush1.bf16.msra.mxu0 %v2052
        %2161 = vmatprep.subr.bf16.mxu0 %v2049
        %2162 = vmatpush1.bf16.msra.mxu0 %v2048
        %2163 = vmatprep.subr.bf16.mxu0 %v2045
        %2164 = vmatpush1.bf16.msra.mxu0 %v2044
        %2165 = vmatprep.subr.bf16.mxu0 0
        %2166 = vmatpush2.bf16.msra.mxu0 0
        %2167 = vmatprep.subr.bf16.mxu0 0
        %2168 = vmatpush2.bf16.msra.mxu0 0
        %2169 = vmatprep.subr.bf16.mxu0 0
        %2170 = vmatpush2.bf16.msra.mxu0 0
        %2171 = vmatprep.subr.bf16.mxu0 0
        %2172 = vmatpush2.bf16.msra.mxu0 0
        %2173 = vmatprep.subr.bf16.mxu0 0
        %2174 = vmatpush2.bf16.msra.mxu0 0
        %2175 = vmatprep.subr.bf16.mxu0 0
        %2176 = vmatpush2.bf16.msra.mxu0 0
        %2177 = vmatprep.subr.bf16.mxu0 0
        %2178 = vmatpush2.bf16.msra.mxu0 0
        %2179 = vmatprep.subr.bf16.mxu0 0
        %2180 = vmatpush2.bf16.msra.mxu0 0
        %2181 = vmatprep.mubr.bf16.mxu0 0
        %2182 = vmatmul.mubr.bf16.gmra.mxu0 %v1891
        %v2183 = vpop.f32.mrf.mxu0
        %v2184 = vadd.f32 %v1937, %v2183
        %v2185 = vpop.f32.mrf.mxu0
        %v2186 = vadd.f32 %v1941, %v2185
        %v2187 = vpop.f32.mrf.mxu0
        %v2188 = vadd.f32 %v1937, %v2187
        %v2189 = vpop.f32.mrf.mxu0
        %v2190 = vadd.f32 %v1941, %v2189
        %2191 = vdwg.mxu0
        %v2192 = vmax.f32 %v2141, 0.0
        %v2193 = vmax.f32 %v2143, 0.0
        %v2194 = vmax.f32 %v2184, 0.0
        %v2195 = vmax.f32 %v2186, 0.0
        %v2196 = vmax.f32 %v2145, 0.0
        %v2197 = vmax.f32 %v2147, 0.0
        %v2198 = vmax.f32 %v2188, 0.0
        %v2199 = vmax.f32 %v2190, 0.0
        %v2200 = vpack.c.bf16 %v2196, %v2192
        %v2201 = vpack.c.bf16 %v2197, %v2193
        %v2202 = vpack.c.bf16 %v2198, %v2194
        %v2203 = vpack.c.bf16 %v2199, %v2195
        %v2204 = vld [vmem:[#allocation18] sm:$0xf]
        %v2205 = vld [vmem:[#allocation18 + $0x4] sm:$0xf]
        %v2206 = vld [vmem:[#allocation18 + $0x8] sm:$0xf]
        %v2207 = vld [vmem:[#allocation18 + $0xc] sm:$0xf]
        %v2208 = vld [vmem:[#allocation18 + $0x10] sm:$0xf]
        %v2209 = vld [vmem:[#allocation18 + $0x14] sm:$0xf]
        %v2210 = vld [vmem:[#allocation18 + $0x18] sm:$0xf]
        %v2211 = vld [vmem:[#allocation18 + $0x1c] sm:$0xf]
        %v2212 = vld [vmem:[#allocation18 + $0x20] sm:$0xf]
        %v2213 = vld [vmem:[#allocation18 + $0x24] sm:$0xf]
        %v2214 = vld [vmem:[#allocation18 + $0x28] sm:$0xf]
        %v2215 = vld [vmem:[#allocation18 + $0x2c] sm:$0xf]
        %v2216 = vld [vmem:[#allocation18 + $0x30] sm:$0xf]
        %v2217 = vld [vmem:[#allocation18 + $0x34] sm:$0xf]
        %v2218 = vld [vmem:[#allocation18 + $0x38] sm:$0xf]
        %v2219 = vld [vmem:[#allocation18 + $0x3c] sm:$0xf]
        %v2220 = vld [vmem:[#allocation18 + $0x40] sm:$0xf]
        %v2221 = vld [vmem:[#allocation18 + $0x44] sm:$0xf]
        %v2222 = vld [vmem:[#allocation18 + $0x48] sm:$0xf]
        %v2223 = vld [vmem:[#allocation18 + $0x4c] sm:$0xf]
        %v2224 = vld [vmem:[#allocation18 + $0x50] sm:$0xf]
        %v2225 = vld [vmem:[#allocation18 + $0x54] sm:$0xf]
        %v2226 = vld [vmem:[#allocation18 + $0x58] sm:$0xf]
        %v2227 = vld [vmem:[#allocation18 + $0x5c] sm:$0xf]
        %v2228 = vld [vmem:[#allocation18 + $0x60] sm:$0xf]
        %v2229 = vld [vmem:[#allocation18 + $0x64] sm:$0xf]
        %v2230 = vld [vmem:[#allocation18 + $0x68] sm:$0xf]
        %v2231 = vld [vmem:[#allocation18 + $0x6c] sm:$0xf]
        %v2232 = vld [vmem:[#allocation18 + $0x70] sm:$0xf]
        %v2233 = vld [vmem:[#allocation18 + $0x74] sm:$0xf]
        %v2234 = vld [vmem:[#allocation18 + $0x78] sm:$0xf]
        %v2235 = vld [vmem:[#allocation18 + $0x7c] sm:$0xf]
        %v2236 = vld [vmem:[#allocation18 + $0x80] sm:$0xf]
        %v2237 = vld [vmem:[#allocation18 + $0x84] sm:$0xf]
        %v2238 = vld [vmem:[#allocation18 + $0x88] sm:$0xf]
        %v2239 = vld [vmem:[#allocation18 + $0x8c] sm:$0xf]
        %v2240 = vld [vmem:[#allocation18 + $0x90] sm:$0xf]
        %v2241 = vld [vmem:[#allocation18 + $0x94] sm:$0xf]
        %v2242 = vld [vmem:[#allocation18 + $0x98] sm:$0xf]
        %v2243 = vld [vmem:[#allocation18 + $0x9c] sm:$0xf]
        %v2244 = vld [vmem:[#allocation18 + $0xa0] sm:$0xf]
        %v2245 = vld [vmem:[#allocation18 + $0xa4] sm:$0xf]
        %v2246 = vld [vmem:[#allocation18 + $0xa8] sm:$0xf]
        %v2247 = vld [vmem:[#allocation18 + $0xac] sm:$0xf]
        %v2248 = vld [vmem:[#allocation18 + $0xb0] sm:$0xf]
        %v2249 = vld [vmem:[#allocation18 + $0xb4] sm:$0xf]
        %v2250 = vld [vmem:[#allocation18 + $0xb8] sm:$0xf]
        %v2251 = vld [vmem:[#allocation18 + $0xbc] sm:$0xf]
        %v2252 = vld [vmem:[#allocation18 + $0xc0] sm:$0xf]
        %v2253 = vld [vmem:[#allocation18 + $0xc4] sm:$0xf]
        %v2254 = vld [vmem:[#allocation18 + $0xc8] sm:$0xf]
        %v2255 = vld [vmem:[#allocation18 + $0xcc] sm:$0xf]
        %v2256 = vld [vmem:[#allocation18 + $0xd0] sm:$0xf]
        %v2257 = vld [vmem:[#allocation18 + $0xd4] sm:$0xf]
        %v2258 = vld [vmem:[#allocation18 + $0xd8] sm:$0xf]
        %v2259 = vld [vmem:[#allocation18 + $0xdc] sm:$0xf]
        %v2260 = vld [vmem:[#allocation18 + $0xe0] sm:$0xf]
        %v2261 = vld [vmem:[#allocation18 + $0xe4] sm:$0xf]
        %v2262 = vld [vmem:[#allocation18 + $0xe8] sm:$0xf]
        %v2263 = vld [vmem:[#allocation18 + $0xec] sm:$0xf]
        %v2264 = vld [vmem:[#allocation18 + $0xf0] sm:$0xf]
        %v2265 = vld [vmem:[#allocation18 + $0xf4] sm:$0xf]
        %v2266 = vld [vmem:[#allocation18 + $0xf8] sm:$0xf]
        %v2267 = vld [vmem:[#allocation18 + $0xfc] sm:$0xf]
        %v2268 = vld [vmem:[#allocation20] sm:$0x1]
        %v2270 = vlaneseq
        %v2271 = vshrl.u32 %v2270, 7
        %v2272 = vsub.s32 0, %v2271
        %v2273 = vrot.slane %v2268, %v2272
        %v2339 = vunpack.c.l.b16 %v2204
        %v2340 = vunpack.c.l.b16 %v2205
        %v2341 = vunpack.c.l.b16 %v2206
        %v2342 = vunpack.c.l.b16 %v2207
        %v2343 = vunpack.c.l.b16 %v2208
        %v2344 = vunpack.c.l.b16 %v2209
        %v2345 = vunpack.c.l.b16 %v2210
        %v2346 = vunpack.c.l.b16 %v2211
        %v2347 = vunpack.c.l.b16 %v2212
        %v2348 = vunpack.c.l.b16 %v2213
        %v2349 = vunpack.c.l.b16 %v2214
        %v2350 = vunpack.c.l.b16 %v2215
        %v2351 = vunpack.c.l.b16 %v2216
        %v2352 = vunpack.c.l.b16 %v2217
        %v2353 = vunpack.c.l.b16 %v2218
        %v2354 = vunpack.c.l.b16 %v2219
        %v2355 = vunpack.c.l.b16 %v2220
        %v2356 = vunpack.c.l.b16 %v2221
        %v2357 = vunpack.c.l.b16 %v2222
        %v2358 = vunpack.c.l.b16 %v2223
        %v2359 = vunpack.c.l.b16 %v2224
        %v2360 = vunpack.c.l.b16 %v2225
        %v2361 = vunpack.c.l.b16 %v2226
        %v2362 = vunpack.c.l.b16 %v2227
        %v2363 = vunpack.c.l.b16 %v2228
        %v2364 = vunpack.c.l.b16 %v2229
        %v2365 = vunpack.c.l.b16 %v2230
        %v2366 = vunpack.c.l.b16 %v2231
        %v2367 = vunpack.c.l.b16 %v2232
        %v2368 = vunpack.c.l.b16 %v2233
        %v2369 = vunpack.c.l.b16 %v2234
        %v2370 = vunpack.c.l.b16 %v2235
        %v2371 = vunpack.c.l.b16 %v2236
        %v2372 = vunpack.c.l.b16 %v2237
        %v2373 = vunpack.c.l.b16 %v2238
        %v2374 = vunpack.c.l.b16 %v2239
        %v2375 = vunpack.c.l.b16 %v2240
        %v2376 = vunpack.c.l.b16 %v2241
        %v2377 = vunpack.c.l.b16 %v2242
        %v2378 = vunpack.c.l.b16 %v2243
        %v2379 = vunpack.c.l.b16 %v2244
        %v2380 = vunpack.c.l.b16 %v2245
        %v2381 = vunpack.c.l.b16 %v2246
        %v2382 = vunpack.c.l.b16 %v2247
        %v2383 = vunpack.c.l.b16 %v2248
        %v2384 = vunpack.c.l.b16 %v2249
        %v2385 = vunpack.c.l.b16 %v2250
        %v2386 = vunpack.c.l.b16 %v2251
        %v2387 = vunpack.c.l.b16 %v2252
        %v2388 = vunpack.c.l.b16 %v2253
        %v2389 = vunpack.c.l.b16 %v2254
        %v2390 = vunpack.c.l.b16 %v2255
        %v2391 = vunpack.c.l.b16 %v2256
        %v2392 = vunpack.c.l.b16 %v2257
        %v2393 = vunpack.c.l.b16 %v2258
        %v2394 = vunpack.c.l.b16 %v2259
        %v2395 = vunpack.c.l.b16 %v2260
        %v2396 = vunpack.c.l.b16 %v2261
        %v2397 = vunpack.c.l.b16 %v2262
        %v2398 = vunpack.c.l.b16 %v2263
        %v2399 = vunpack.c.l.b16 %v2264
        %v2400 = vunpack.c.l.b16 %v2265
        %v2401 = vunpack.c.l.b16 %v2266
        %v2402 = vunpack.c.l.b16 %v2267
        %v2403 = vpack.c.b16 %v2340, %v2339
        %v2404 = vpack.c.b16 %v2342, %v2341
        %v2405 = vpack.c.b16 %v2344, %v2343
        %v2406 = vpack.c.b16 %v2346, %v2345
        %v2407 = vpack.c.b16 %v2348, %v2347
        %v2408 = vpack.c.b16 %v2350, %v2349
        %v2409 = vpack.c.b16 %v2352, %v2351
        %v2410 = vpack.c.b16 %v2354, %v2353
        %v2411 = vpack.c.b16 %v2356, %v2355
        %v2412 = vpack.c.b16 %v2358, %v2357
        %v2413 = vpack.c.b16 %v2360, %v2359
        %v2414 = vpack.c.b16 %v2362, %v2361
        %v2415 = vpack.c.b16 %v2364, %v2363
        %v2416 = vpack.c.b16 %v2366, %v2365
        %v2417 = vpack.c.b16 %v2368, %v2367
        %v2418 = vpack.c.b16 %v2370, %v2369
        %v2419 = vpack.c.b16 %v2372, %v2371
        %v2420 = vpack.c.b16 %v2374, %v2373
        %v2421 = vpack.c.b16 %v2376, %v2375
        %v2422 = vpack.c.b16 %v2378, %v2377
        %v2423 = vpack.c.b16 %v2380, %v2379
        %v2424 = vpack.c.b16 %v2382, %v2381
        %v2425 = vpack.c.b16 %v2384, %v2383
        %v2426 = vpack.c.b16 %v2386, %v2385
        %v2427 = vpack.c.b16 %v2388, %v2387
        %v2428 = vpack.c.b16 %v2390, %v2389
        %v2429 = vpack.c.b16 %v2392, %v2391
        %v2430 = vpack.c.b16 %v2394, %v2393
        %v2431 = vpack.c.b16 %v2396, %v2395
        %v2432 = vpack.c.b16 %v2398, %v2397
        %v2433 = vpack.c.b16 %v2400, %v2399
        %v2434 = vpack.c.b16 %v2402, %v2401
        %2467 = vmatprep.subr.bf16.mxu0 0
        %2468 = vmatpush1.bf16.msra.mxu0 %v2410
        %2469 = vmatprep.subr.bf16.mxu0 0
        %2470 = vmatpush1.bf16.msra.mxu0 %v2409
        %2471 = vmatprep.subr.bf16.mxu0 0
        %2472 = vmatpush1.bf16.msra.mxu0 %v2408
        %2473 = vmatprep.subr.bf16.mxu0 0
        %2474 = vmatpush1.bf16.msra.mxu0 %v2407
        %2475 = vmatprep.subr.bf16.mxu0 0
        %2476 = vmatpush1.bf16.msra.mxu0 %v2406
        %2477 = vmatprep.subr.bf16.mxu0 0
        %2478 = vmatpush1.bf16.msra.mxu0 %v2405
        %2479 = vmatprep.subr.bf16.mxu0 0
        %2480 = vmatpush1.bf16.msra.mxu0 %v2404
        %2481 = vmatprep.subr.bf16.mxu0 0
        %2482 = vmatpush1.bf16.msra.mxu0 %v2403
        %2483 = vmatprep.subr.bf16.mxu0 0
        %2484 = vmatpush2.bf16.msra.mxu0 %v2418
        %2485 = vmatprep.subr.bf16.mxu0 0
        %2486 = vmatpush2.bf16.msra.mxu0 %v2417
        %2487 = vmatprep.subr.bf16.mxu0 0
        %2488 = vmatpush2.bf16.msra.mxu0 %v2416
        %2489 = vmatprep.subr.bf16.mxu0 0
        %2490 = vmatpush2.bf16.msra.mxu0 %v2415
        %2491 = vmatprep.subr.bf16.mxu0 0
        %2492 = vmatpush2.bf16.msra.mxu0 %v2414
        %2493 = vmatprep.subr.bf16.mxu0 0
        %2494 = vmatpush2.bf16.msra.mxu0 %v2413
        %2495 = vmatprep.subr.bf16.mxu0 0
        %2496 = vmatpush2.bf16.msra.mxu0 %v2412
        %2497 = vmatprep.subr.bf16.mxu0 0
        %2498 = vmatpush2.bf16.msra.mxu0 %v2411
        %2499 = vmatprep.mubr.bf16.mxu0 %v2201
        %2500 = vmatmul.mubr.bf16.gmra.mxu0 %v2200
        %v2501 = vpop.f32.mrf.mxu0
        %v2502 = vadd.f32 %v2273, %v2501
        %v2503 = vpop.f32.mrf.mxu0
        %v2504 = vpop.f32.mrf.mxu0
        %v2505 = vadd.f32 %v2273, %v2504
        %v2506 = vpop.f32.mrf.mxu0
        %2507 = vdwg.mxu0
        %2508 = vmatprep.subr.bf16.mxu0 0
        %2509 = vmatpush1.bf16.msra.mxu0 %v2426
        %2510 = vmatprep.subr.bf16.mxu0 0
        %2511 = vmatpush1.bf16.msra.mxu0 %v2425
        %2512 = vmatprep.subr.bf16.mxu0 0
        %2513 = vmatpush1.bf16.msra.mxu0 %v2424
        %2514 = vmatprep.subr.bf16.mxu0 0
        %2515 = vmatpush1.bf16.msra.mxu0 %v2423
        %2516 = vmatprep.subr.bf16.mxu0 0
        %2517 = vmatpush1.bf16.msra.mxu0 %v2422
        %2518 = vmatprep.subr.bf16.mxu0 0
        %2519 = vmatpush1.bf16.msra.mxu0 %v2421
        %2520 = vmatprep.subr.bf16.mxu0 0
        %2521 = vmatpush1.bf16.msra.mxu0 %v2420
        %2522 = vmatprep.subr.bf16.mxu0 0
        %2523 = vmatpush1.bf16.msra.mxu0 %v2419
        %2524 = vmatprep.subr.bf16.mxu0 0
        %2525 = vmatpush2.bf16.msra.mxu0 %v2434
        %2526 = vmatprep.subr.bf16.mxu0 0
        %2527 = vmatpush2.bf16.msra.mxu0 %v2433
        %2528 = vmatprep.subr.bf16.mxu0 0
        %2529 = vmatpush2.bf16.msra.mxu0 %v2432
        %2530 = vmatprep.subr.bf16.mxu0 0
        %2531 = vmatpush2.bf16.msra.mxu0 %v2431
        %2532 = vmatprep.subr.bf16.mxu0 0
        %2533 = vmatpush2.bf16.msra.mxu0 %v2430
        %2534 = vmatprep.subr.bf16.mxu0 0
        %2535 = vmatpush2.bf16.msra.mxu0 %v2429
        %2536 = vmatprep.subr.bf16.mxu0 0
        %2537 = vmatpush2.bf16.msra.mxu0 %v2428
        %2538 = vmatprep.subr.bf16.mxu0 0
        %2539 = vmatpush2.bf16.msra.mxu0 %v2427
        %2540 = vmatprep.mubr.bf16.mxu0 %v2203
        %2541 = vmatmul.mubr.bf16.gmra.mxu0 %v2202
        %v2542 = vpop.f32.mrf.mxu0
        %v2543 = vadd.f32 %v2502, %v2542
        %v2544 = vpop.f32.mrf.mxu0
        %v2545 = vpop.f32.mrf.mxu0
        %v2546 = vadd.f32 %v2505, %v2545
        %v2547 = vpop.f32.mrf.mxu0
        %2548 = vdwg.mxu0
        %v2549 = vadd.f32 %v1849, %v2543
        %v2550 = vadd.f32 %v1850, %v2546
        %2551 = vst [vmem:[%s660] sm:$0xff] %v2549
        %2552 = vst [vmem:[%s660 + $0x8] sm:$0xff] %v2550
        %s2553 = sand.u32 %s366, 1
        %s2554 = scalar_lea.sflag [#allocation5], %s2553
        %s2555 = sand.u32 %s366, 1
        %s2556 = smul.addr %s2555, 16
        %s2557 = scalar_lea.vmem [#allocation23], %s2556
        // Predicated region
        $region129: #{tpu_custom_call.1} parent=79 // pred_check
          %p2558 = pneg %p376
        $region130: #{tpu_custom_call.1} parent=79 // pred_check_branch
          %2560 = sbr.rel (%p2558) target = $region132
        $region131: #{tpu_custom_call.1} parent=79 // pred_region
          %s2562 = ssub.s32 256, 256
          %2563 = vsyncadd %s2554, %s2562
          %s2564 = smul.addr %s38, 2
          %s2565 = smul.addr %s2564, 128
          %s2566 = scalar_lea.hbm %s15, %s2565
          %s2567 = sshll.u32 %s2557, 4
          %s2568 = int_to_ptr.vmem [resolvable:$true] %s2567
          %2573 = dma.vmem_to_hbm [thread:$0]  %s2568, 256, %s2566, %s2554, 128, 128, 8
        $region132: #{tpu_custom_call.1} parent=79 // pred_fallthru
          _
      $region80: #{tpu_custom_call.1} parent=5 // pred_fallthru
        _
      %p2574 = scmp.le.s32.totalorder 2, %s33
      // Predicated region
      $region133: #{tpu_custom_call.1} parent=5 // pred_check
        %p2575 = pneg %p2574
      $region134: #{tpu_custom_call.1} parent=5 // pred_check_branch
        %2577 = sbr.rel (%p2575) target = $region136
      $region135: #{tpu_custom_call.1} parent=5 // pred_region
        %s2578 = ssub.s32 %s33, 2
        // Predicated region
        $region137: #{tpu_custom_call.1} parent=135 // pred_check
          %p2579 = pneg %p382
        $region138: #{tpu_custom_call.1} parent=135 // pred_check_branch
          %2581 = sbr.rel (%p2579) target = $region140
        $region139: #{tpu_custom_call.1} parent=135 // pred_region
          %s2582 = sand.u32 %s367, 1
          %s2583 = scalar_lea.sflag [#allocation5], %s2582
          %s2584 = sand.u32 %s367, 1
          %s2585 = smul.addr %s2584, 16
          %s2586 = scalar_lea.vmem [#allocation23], %s2585
          %2587 = dma.done %s2583, 256
        $region140: #{tpu_custom_call.1} parent=135 // pred_fallthru
          _
      $region136: #{tpu_custom_call.1} parent=5 // pred_fallthru
        _
    $region6: #{tpu_custom_call.1} parent=1 // loop_footer
      %s37 = sadd.s32 1, %s33
    $region7: #{tpu_custom_call.1} parent=1 // loop_footer_branch
      %32 = sbr.rel target = $region3
    $region8: #{tpu_custom_call.1} parent=1 // loop_exit
      _
    %2588 = vsyncpa [#allocation4], 1
    %s2589 = scalar_lea.sflag [#allocation4], 1
    %2590 = vsyncpa %s2589, 1
    %2591 = vsyncpa [#allocation7], 1
    %2592 = vsyncpa [#allocation10], 1
    %2593 = vsyncpa [#allocation13], 1
    %2594 = vsyncpa [#allocation16], 1
    %2595 = vsyncpa [#allocation19], 1
    %2596 = vsyncpa [#allocation22], 1
    %2597 = vsyncpa [#allocation5], 1
    %s2598 = scalar_lea.sflag [#allocation5], 1
    %2599 = vsyncpa %s2598, 1

</llo_original>
